<compile_context>
chip_gen: v5e
topology: v5e:2x2
jax: 0.10.0
libtpu: 0.0.40
codegen_flags: <defaults>
</compile_context>

<pallas_src>
import functools

import jax
import jax.numpy as jnp
from jax.experimental import pallas as pl
from jax.experimental.pallas import tpu as pltpu


# ---------------------------------------------------------------------------
# Fused Pallas kernel: encode -> reparameterize -> decode, all in VMEM.
#
# Weight refs are (in_features, out_features); bias refs are (1, out_features)
# so they broadcast over the batch rows.  All matmuls accumulate in f32 on the
# MXU; relu/sigmoid/exp run on the VPU/EUP slots.
# ---------------------------------------------------------------------------
def _vae_fused_kernel(
    x_ref, eps_ref,
    w1_ref, b1_ref,      # fc1: (D, H), (1, H)
    w2_ref, b2_ref,      # fc2: (H, H), (1, H)
    w34_ref, b34_ref,    # fc3||fc4 fused: (H, 2Z), (1, 2Z)
    w5_ref, b5_ref,      # fc5: (Z, H), (1, H)
    w6_ref, b6_ref,      # fc6: (H, H), (1, H)
    w7_ref, b7_ref,      # fc7: (H, D), (1, D)
    xr_ref, mu_ref, lv_ref,
    *, z_dim,
):
    x = x_ref[...]

    # ---- encode ----
    h = jnp.dot(x, w1_ref[...], preferred_element_type=jnp.float32) + b1_ref[...]
    h = jnp.dot(h, w2_ref[...], preferred_element_type=jnp.float32) + b2_ref[...]
    h = jnp.maximum(h, 0.0)                                   # relu

    ml = jnp.dot(h, w34_ref[...], preferred_element_type=jnp.float32) + b34_ref[...]
    mu = ml[:, :z_dim]
    log_var = ml[:, z_dim:]

    # ---- reparameterize: z = mu + eps * exp(log_var / 2) ----
    z = mu + eps_ref[...] * jnp.exp(log_var * 0.5)

    # ---- decode ----
    d = jnp.dot(z, w5_ref[...], preferred_element_type=jnp.float32) + b5_ref[...]
    d = jnp.dot(d, w6_ref[...], preferred_element_type=jnp.float32) + b6_ref[...]
    d = jnp.maximum(d, 0.0)                                   # relu
    logits = jnp.dot(d, w7_ref[...], preferred_element_type=jnp.float32) + b7_ref[...]

    xr_ref[...] = jax.nn.sigmoid(logits).astype(xr_ref.dtype)
    mu_ref[...] = mu.astype(mu_ref.dtype)
    lv_ref[...] = log_var.astype(lv_ref.dtype)


def vae_forward_fused(prepared, x, eps):
    """Single-launch VAE forward.  `prepared` comes from prepare_params()."""
    w1, b1 = prepared["fc1"]
    w2, b2 = prepared["fc2"]
    w34, b34 = prepared["fc34"]
    w5, b5 = prepared["fc5"]
    w6, b6 = prepared["fc6"]
    w7, b7 = prepared["fc7"]

    B = x.shape[0]
    z_dim = eps.shape[1]
    image_size = w7.shape[1]

    kernel = functools.partial(_vae_fused_kernel, z_dim=z_dim)
    x_reconst, mu, log_var = pl.pallas_call(
        kernel,
        out_shape=(
            jax.ShapeDtypeStruct((B, image_size), x.dtype),   # x_reconst
            jax.ShapeDtypeStruct((B, z_dim), x.dtype),        # mu
            jax.ShapeDtypeStruct((B, z_dim), x.dtype),        # log_var
        ),
        # No grid / BlockSpecs: each operand is one full VMEM block, single
        # buffered (no pipeline), well under every generation's VMEM budget.
        compiler_params=pltpu.CompilerParams(
            vmem_limit_bytes=32 * 1024 * 1024,
        ),
    )(x, eps, w1, b1, w2, b2, w34, b34, w5, b5, w6, b6, w7, b7)
    return x_reconst, mu, log_var


# ---------------------------------------------------------------------------
# Parameter handling.
# init_vae_params keeps the PyTorch nn.Linear layout: W (out, in), b (out,).
# prepare_params does the one-time layout work so the hot path has zero glue:
#   * transpose W -> (in, out), reshape b -> (1, out)
#   * concatenate fc3 and fc4 into one (h_dim, 2*z_dim) matmul
# ---------------------------------------------------------------------------
def init_linear(key, in_features, out_features, dtype=jnp.float32):
    kw, kb = jax.random.split(key)
    bound = 1.0 / jnp.sqrt(in_features)
    w = jax.random.uniform(kw, (out_features, in_features), dtype, -bound, bound)
    b = jax.random.uniform(kb, (out_features,), dtype, -bound, bound)
    return w, b


def init_vae_params(key, image_size, h_dim, z_dim):
    keys = jax.random.split(key, 7)
    return {
        "fc1": init_linear(keys[0], image_size, h_dim),
        "fc2": init_linear(keys[1], h_dim, h_dim),
        "fc3": init_linear(keys[2], h_dim, z_dim),
        "fc4": init_linear(keys[3], h_dim, z_dim),
        "fc5": init_linear(keys[4], z_dim, h_dim),
        "fc6": init_linear(keys[5], h_dim, h_dim),
        "fc7": init_linear(keys[6], h_dim, image_size),
    }


def prepare_params(params):
    def t(wb):
        w, b = wb
        return jnp.asarray(w).T, jnp.asarray(b).reshape(1, -1)

    p = {k: t(v) for k, v in params.items()}
    w3, b3 = p.pop("fc3")
    w4, b4 = p.pop("fc4")
    p["fc34"] = (jnp.concatenate([w3, w4], axis=1),
                 jnp.concatenate([b3, b4], axis=1))
    return p


# ---------------------------------------------------------------------------
# Pure-JAX reference (PyTorch-layout params) for a correctness check.
# ---------------------------------------------------------------------------
def vae_forward_ref(params, x, eps):
    def lin(p, a):
        w, b = p
        return a @ w.T + b

    h = lin(params["fc1"], x)
    h = jax.nn.relu(lin(params["fc2"], h))
    mu = lin(params["fc3"], h)
    log_var = lin(params["fc4"], h)
    z = mu + eps * jnp.exp(log_var * 0.5)
    d = lin(params["fc5"], z)
    d = jax.nn.relu(lin(params["fc6"], d))
    x_reconst = jax.nn.sigmoid(lin(params["fc7"], d))
    return x_reconst, mu, log_var


# ---------------------------------------------------------------------------
if __name__ == "__main__":
    # Small, TPU-friendly shapes consistent with the module's FC structure
    # (image_size / h_dim multiples of 128, 2*z_dim = 128 so the fused
    # fc3||fc4 output tile is lane-dense).
    batch, image_size, h_dim, z_dim = 8, 512, 256, 64

    key = jax.random.PRNGKey(0)
    k_params, k_x, k_eps = jax.random.split(key, 3)

    params = init_vae_params(k_params, image_size, h_dim, z_dim)
    prepared = prepare_params(params)

    x = jax.random.uniform(k_x, (batch, image_size), jnp.float32)   # "image" batch
    eps = jax.random.normal(k_eps, (batch, z_dim), jnp.float32)     # reparam noise

    fwd = jax.jit(vae_forward_fused)
    x_reconst, mu, log_var = fwd(prepared, x, eps)
    jax.block_until_ready((x_reconst, mu, log_var))

    # shape + numerics check against the pure-JAX reference
    xr_ref, mu_ref, lv_ref = vae_forward_ref(params, x, eps)
    assert x_reconst.shape == (batch, image_size)
    assert mu.shape == (batch, z_dim) and log_var.shape == (batch, z_dim)
    assert jnp.allclose(mu, mu_ref, atol=2e-3, rtol=2e-3)
    assert jnp.allclose(log_var, lv_ref, atol=2e-3, rtol=2e-3)
    assert jnp.allclose(x_reconst, xr_ref, atol=2e-3, rtol=2e-3)

    print("KERNEL_OK")
</pallas_src>

<mosaic_0001>
module attributes {stable_mosaic.version = 11 : i64} {
  func.func @_vae_fused_kernel(%arg0: memref<8x512xf32, #tpu.memory_space<vmem>>, %arg1: memref<8x64xf32, #tpu.memory_space<vmem>>, %arg2: memref<512x256xf32, #tpu.memory_space<vmem>>, %arg3: memref<1x256xf32, #tpu.memory_space<vmem>>, %arg4: memref<256x256xf32, #tpu.memory_space<vmem>>, %arg5: memref<1x256xf32, #tpu.memory_space<vmem>>, %arg6: memref<256x128xf32, #tpu.memory_space<vmem>>, %arg7: memref<1x128xf32, #tpu.memory_space<vmem>>, %arg8: memref<64x256xf32, #tpu.memory_space<vmem>>, %arg9: memref<1x256xf32, #tpu.memory_space<vmem>>, %arg10: memref<256x256xf32, #tpu.memory_space<vmem>>, %arg11: memref<1x256xf32, #tpu.memory_space<vmem>>, %arg12: memref<256x512xf32, #tpu.memory_space<vmem>>, %arg13: memref<1x512xf32, #tpu.memory_space<vmem>>, %arg14: memref<8x512xf32, #tpu.memory_space<vmem>>, %arg15: memref<8x64xf32, #tpu.memory_space<vmem>>, %arg16: memref<8x64xf32, #tpu.memory_space<vmem>>) attributes {dimension_semantics = [], scalar_prefetch = 0 : i64, scratch_operands = 0 : i64, tpu.core_type = #tpu.core_type<tc>} {
    %c0 = arith.constant 0 : index
    %c0_0 = arith.constant 0 : index
    %0 = vector.load %arg0[%c0, %c0_0] : memref<8x512xf32, #tpu.memory_space<vmem>>, vector<8x512xf32>
    %c0_1 = arith.constant 0 : index
    %c0_2 = arith.constant 0 : index
    %1 = vector.load %arg2[%c0_1, %c0_2] : memref<512x256xf32, #tpu.memory_space<vmem>>, vector<512x256xf32>
    %cst = arith.constant dense<0.000000e+00> : vector<8x256xf32>
    %2 = tpu.matmul %0, %1, %cst {dimension_numbers = #tpu.dot_dimension_numbers<[1], [0], [0], [1], [0, 0, 1, 1], [], []>} : vector<8x512xf32>, vector<512x256xf32>, vector<8x256xf32> -> vector<8x256xf32>
    %c0_3 = arith.constant 0 : index
    %c0_4 = arith.constant 0 : index
    %3 = vector.load %arg3[%c0_3, %c0_4] : memref<1x256xf32, #tpu.memory_space<vmem>>, vector<1x256xf32>
    %4 = vector.broadcast %3 : vector<1x256xf32> to vector<8x256xf32>
    %5 = arith.addf %2, %4 : vector<8x256xf32>
    %c0_5 = arith.constant 0 : index
    %c0_6 = arith.constant 0 : index
    %6 = vector.load %arg4[%c0_5, %c0_6] : memref<256x256xf32, #tpu.memory_space<vmem>>, vector<256x256xf32>
    %cst_7 = arith.constant dense<0.000000e+00> : vector<8x256xf32>
    %7 = tpu.matmul %5, %6, %cst_7 {dimension_numbers = #tpu.dot_dimension_numbers<[1], [0], [0], [1], [0, 0, 1, 1], [], []>} : vector<8x256xf32>, vector<256x256xf32>, vector<8x256xf32> -> vector<8x256xf32>
    %c0_8 = arith.constant 0 : index
    %c0_9 = arith.constant 0 : index
    %8 = vector.load %arg5[%c0_8, %c0_9] : memref<1x256xf32, #tpu.memory_space<vmem>>, vector<1x256xf32>
    %9 = vector.broadcast %8 : vector<1x256xf32> to vector<8x256xf32>
    %10 = arith.addf %7, %9 : vector<8x256xf32>
    %cst_10 = arith.constant 0.000000e+00 : f32
    %11 = vector.broadcast %cst_10 : f32 to vector<8x256xf32>
    %12 = arith.maximumf %10, %11 : vector<8x256xf32>
    %c0_11 = arith.constant 0 : index
    %c0_12 = arith.constant 0 : index
    %13 = vector.load %arg6[%c0_11, %c0_12] : memref<256x128xf32, #tpu.memory_space<vmem>>, vector<256x128xf32>
    %cst_13 = arith.constant dense<0.000000e+00> : vector<8x128xf32>
    %14 = tpu.matmul %12, %13, %cst_13 {dimension_numbers = #tpu.dot_dimension_numbers<[1], [0], [0], [1], [0, 0, 1, 1], [], []>} : vector<8x256xf32>, vector<256x128xf32>, vector<8x128xf32> -> vector<8x128xf32>
    %c0_14 = arith.constant 0 : index
    %c0_15 = arith.constant 0 : index
    %15 = vector.load %arg7[%c0_14, %c0_15] : memref<1x128xf32, #tpu.memory_space<vmem>>, vector<1x128xf32>
    %16 = vector.broadcast %15 : vector<1x128xf32> to vector<8x128xf32>
    %17 = arith.addf %14, %16 : vector<8x128xf32>
    %18 = vector.extract_strided_slice %17 {offsets = [0, 0], sizes = [8, 64], strides = [1, 1]} : vector<8x128xf32> to vector<8x64xf32>
    %19 = vector.extract_strided_slice %17 {offsets = [0, 64], sizes = [8, 64], strides = [1, 1]} : vector<8x128xf32> to vector<8x64xf32>
    %c0_16 = arith.constant 0 : index
    %c0_17 = arith.constant 0 : index
    %20 = vector.load %arg1[%c0_16, %c0_17] : memref<8x64xf32, #tpu.memory_space<vmem>>, vector<8x64xf32>
    %cst_18 = arith.constant 5.000000e-01 : f32
    %21 = vector.broadcast %cst_18 : f32 to vector<8x64xf32>
    %22 = arith.mulf %19, %21 : vector<8x64xf32>
    %23 = math.exp %22 : vector<8x64xf32>
    %24 = arith.mulf %20, %23 : vector<8x64xf32>
    %25 = arith.addf %18, %24 : vector<8x64xf32>
    %c0_19 = arith.constant 0 : index
    %c0_20 = arith.constant 0 : index
    %26 = vector.load %arg8[%c0_19, %c0_20] : memref<64x256xf32, #tpu.memory_space<vmem>>, vector<64x256xf32>
    %cst_21 = arith.constant dense<0.000000e+00> : vector<8x256xf32>
    %27 = tpu.matmul %25, %26, %cst_21 {dimension_numbers = #tpu.dot_dimension_numbers<[1], [0], [0], [1], [0, 0, 1, 1], [], []>} : vector<8x64xf32>, vector<64x256xf32>, vector<8x256xf32> -> vector<8x256xf32>
    %c0_22 = arith.constant 0 : index
    %c0_23 = arith.constant 0 : index
    %28 = vector.load %arg9[%c0_22, %c0_23] : memref<1x256xf32, #tpu.memory_space<vmem>>, vector<1x256xf32>
    %29 = vector.broadcast %28 : vector<1x256xf32> to vector<8x256xf32>
    %30 = arith.addf %27, %29 : vector<8x256xf32>
    %c0_24 = arith.constant 0 : index
    %c0_25 = arith.constant 0 : index
    %31 = vector.load %arg10[%c0_24, %c0_25] : memref<256x256xf32, #tpu.memory_space<vmem>>, vector<256x256xf32>
    %cst_26 = arith.constant dense<0.000000e+00> : vector<8x256xf32>
    %32 = tpu.matmul %30, %31, %cst_26 {dimension_numbers = #tpu.dot_dimension_numbers<[1], [0], [0], [1], [0, 0, 1, 1], [], []>} : vector<8x256xf32>, vector<256x256xf32>, vector<8x256xf32> -> vector<8x256xf32>
    %c0_27 = arith.constant 0 : index
    %c0_28 = arith.constant 0 : index
    %33 = vector.load %arg11[%c0_27, %c0_28] : memref<1x256xf32, #tpu.memory_space<vmem>>, vector<1x256xf32>
    %34 = vector.broadcast %33 : vector<1x256xf32> to vector<8x256xf32>
    %35 = arith.addf %32, %34 : vector<8x256xf32>
    %cst_29 = arith.constant 0.000000e+00 : f32
    %36 = vector.broadcast %cst_29 : f32 to vector<8x256xf32>
    %37 = arith.maximumf %35, %36 : vector<8x256xf32>
    %c0_30 = arith.constant 0 : index
    %c0_31 = arith.constant 0 : index
    %38 = vector.load %arg12[%c0_30, %c0_31] : memref<256x512xf32, #tpu.memory_space<vmem>>, vector<256x512xf32>
    %cst_32 = arith.constant dense<0.000000e+00> : vector<8x512xf32>
    %39 = tpu.matmul %37, %38, %cst_32 {dimension_numbers = #tpu.dot_dimension_numbers<[1], [0], [0], [1], [0, 0, 1, 1], [], []>} : vector<8x256xf32>, vector<256x512xf32>, vector<8x512xf32> -> vector<8x512xf32>
    %c0_33 = arith.constant 0 : index
    %c0_34 = arith.constant 0 : index
    %40 = vector.load %arg13[%c0_33, %c0_34] : memref<1x512xf32, #tpu.memory_space<vmem>>, vector<1x512xf32>
    %41 = vector.broadcast %40 : vector<1x512xf32> to vector<8x512xf32>
    %42 = arith.addf %39, %41 : vector<8x512xf32>
    %43 = arith.negf %42 : vector<8x512xf32>
    %44 = math.exp %43 : vector<8x512xf32>
    %cst_35 = arith.constant 1.000000e+00 : f32
    %45 = vector.broadcast %cst_35 : f32 to vector<8x512xf32>
    %46 = arith.addf %45, %44 : vector<8x512xf32>
    %47 = arith.divf %45, %46 : vector<8x512xf32>
    %c0_36 = arith.constant 0 : index
    %c0_37 = arith.constant 0 : index
    %48 = vector.load %arg14[%c0_36, %c0_37] : memref<8x512xf32, #tpu.memory_space<vmem>>, vector<8x512xf32>
    tpu.vector_store %arg14[%c0_36, %c0_37], %47 {strides = array<i32>} : memref<8x512xf32, #tpu.memory_space<vmem>>, vector<8x512xf32>,
    %c0_38 = arith.constant 0 : index
    %c0_39 = arith.constant 0 : index
    %49 = vector.load %arg15[%c0_38, %c0_39] : memref<8x64xf32, #tpu.memory_space<vmem>>, vector<8x64xf32>
    tpu.vector_store %arg15[%c0_38, %c0_39], %18 {strides = array<i32>} : memref<8x64xf32, #tpu.memory_space<vmem>>, vector<8x64xf32>,
    %c0_40 = arith.constant 0 : index
    %c0_41 = arith.constant 0 : index
    %50 = vector.load %arg16[%c0_40, %c0_41] : memref<8x64xf32, #tpu.memory_space<vmem>>, vector<8x64xf32>
    tpu.vector_store %arg16[%c0_40, %c0_41], %19 {strides = array<i32>} : memref<8x64xf32, #tpu.memory_space<vmem>>, vector<8x64xf32>,
    return
  }
}

</mosaic_0001>

<llo_original>
// kernel: vae_forward_fused.1
$region0: #{vae_forward_fused.1}
  #allocation0 [shape = 'u32[]', space=smem, size = 0x4, offset = 0x4, fixed_abs, tag = 'smem constant byte address 0x4 - core index']
  #allocation1 [shape = 'u32[72,128]{1,0:T(1,128)}', space=vmem, size = 0x9000, scoped, tag = 'internal scratch']
  %s0 = inlined_call_operand.hbm [shape: f32[8,512], index: 0, kind: input, shape index: {}]
  %s1 = inlined_call_operand.vmem [shape: f32[8,64], index: 1, kind: input, shape index: {}]
  %s2 = inlined_call_operand.hbm [shape: f32[512,256], index: 2, kind: input, shape index: {}]
  %s3 = inlined_call_operand.hbm [shape: f32[1,256], index: 3, kind: input, shape index: {}]
  %s4 = inlined_call_operand.hbm [shape: f32[256,256], index: 4, kind: input, shape index: {}]
  %s5 = inlined_call_operand.hbm [shape: f32[1,256], index: 5, kind: input, shape index: {}]
  %s6 = inlined_call_operand.hbm [shape: f32[256,128], index: 6, kind: input, shape index: {}]
  %s7 = inlined_call_operand.hbm [shape: f32[1,128], index: 7, kind: input, shape index: {}]
  %s8 = inlined_call_operand.hbm [shape: f32[64,256], index: 8, kind: input, shape index: {}]
  %s9 = inlined_call_operand.hbm [shape: f32[1,256], index: 9, kind: input, shape index: {}]
  %s10 = inlined_call_operand.hbm [shape: f32[256,256], index: 10, kind: input, shape index: {}]
  %s11 = inlined_call_operand.hbm [shape: f32[1,256], index: 11, kind: input, shape index: {}]
  %s12 = inlined_call_operand.hbm [shape: f32[256,512], index: 12, kind: input, shape index: {}]
  %s13 = inlined_call_operand.vmem [shape: f32[1,512], index: 13, kind: input, shape index: {}]
  %s14 = inlined_call_operand.hbm [shape: f32[8,512], index: 14, kind: output, shape index: {0}]
  %s15 = inlined_call_operand.hbm [shape: f32[8,64], index: 15, kind: output, shape index: {1}]
  %s16 = inlined_call_operand.hbm [shape: f32[8,64], index: 16, kind: output, shape index: {2}]
  %17 = xla_tuple %s14, %s15, %s16
  %s18 = sld [smem:[#allocation0]]
  $region130: #{vae_forward_fused.1} parent=0
    _
  %s20 = ssub.s32 1, %s18
  %s21 = scalar_select 0, %s20, %s18
  $region1: #{vae_forward_fused.1} parent=0
    #allocation2 [shape = 'u8[16384]{0}', space=vmem, size = 0x4000, scoped, tag = 'input window, operand 0, single buffered']
    #allocation3 [shape = 's32[1]{0}', space=sflag, size = 0x4, scoped, tag = 'scoped memory for vae_forward_fused.1']
    #allocation4 [shape = 's32[1]{0}', space=sflag, size = 0x4, scoped, tag = 'scoped memory for vae_forward_fused.1']
    #allocation5 [shape = 'u8[524288]{0}', space=vmem, size = 0x80000, scoped, tag = 'input window, operand 2, single buffered']
    #allocation6 [shape = 's32[1]{0}', space=sflag, size = 0x4, scoped, tag = 'scoped memory for vae_forward_fused.1']
    #allocation7 [shape = 'u8[1024]{0}', space=vmem, size = 0x400, scoped, tag = 'input window, operand 3, single buffered']
    #allocation8 [shape = 'u8[262144]{0}', space=vmem, size = 0x40000, scoped, tag = 'input window, operand 4, single buffered']
    #allocation9 [shape = 's32[1]{0}', space=sflag, size = 0x4, scoped, tag = 'scoped memory for vae_forward_fused.1']
    #allocation10 [shape = 'u8[1024]{0}', space=vmem, size = 0x400, scoped, tag = 'input window, operand 5, single buffered']
    #allocation11 [shape = 'u8[131072]{0}', space=vmem, size = 0x20000, scoped, tag = 'input window, operand 6, single buffered']
    #allocation12 [shape = 's32[1]{0}', space=sflag, size = 0x4, scoped, tag = 'scoped memory for vae_forward_fused.1']
    #allocation13 [shape = 'u8[512]{0}', space=vmem, size = 0x400, scoped, tag = 'input window, operand 7, single buffered']
    #allocation14 [shape = 'u8[65536]{0}', space=vmem, size = 0x10000, scoped, tag = 'input window, operand 8, single buffered']
    #allocation15 [shape = 's32[1]{0}', space=sflag, size = 0x4, scoped, tag = 'scoped memory for vae_forward_fused.1']
    #allocation16 [shape = 'u8[1024]{0}', space=vmem, size = 0x400, scoped, tag = 'input window, operand 9, single buffered']
    #allocation17 [shape = 'u8[262144]{0}', space=vmem, size = 0x40000, scoped, tag = 'input window, operand 10, single buffered']
    #allocation18 [shape = 's32[1]{0}', space=sflag, size = 0x4, scoped, tag = 'scoped memory for vae_forward_fused.1']
    #allocation19 [shape = 'u8[1024]{0}', space=vmem, size = 0x400, scoped, tag = 'input window, operand 11, single buffered']
    #allocation20 [shape = 'u8[524288]{0}', space=vmem, size = 0x80000, scoped, tag = 'input window, operand 12, single buffered']
    #allocation21 [shape = 's32[1]{0}', space=sflag, size = 0x4, scoped, tag = 'scoped memory for vae_forward_fused.1']
    #allocation22 [shape = 'u8[16384]{0}', space=vmem, size = 0x4000, scoped, tag = 'output window, operand 0, single buffered']
    #allocation23 [shape = 'u8[4096]{0}', space=vmem, size = 0x1000, scoped, tag = 'output window, operand 1, single buffered']
    #allocation24 [shape = 's32[1]{0}', space=sflag, size = 0x4, scoped, tag = 'scoped memory for vae_forward_fused.1']
    #allocation25 [shape = 'u8[4096]{0}', space=vmem, size = 0x1000, scoped, tag = 'output window, operand 2, single buffered']
    %22 = vsyncpa [#allocation3], 0
    %23 = vsyncpa [#allocation6], 0
    %24 = vsyncpa [#allocation9], 0
    %25 = vsyncpa [#allocation12], 0
    %26 = vsyncpa [#allocation15], 0
    %27 = vsyncpa [#allocation18], 0
    %28 = vsyncpa [#allocation21], 0
    %29 = vsyncpa [#allocation4], 0
    %30 = vsyncpa [#allocation24], 0
    // Predicated region
    $region2: #{vae_forward_fused.1} parent=1 // pred_check
      _
    $region3: #{vae_forward_fused.1} parent=1 // pred_check_branch
      %32 = sbr.rel (0) target = $region5
    $region4: #{vae_forward_fused.1} parent=1 // pred_region
      %34 = vsyncadd [#allocation3], 0
      %s36 = sshll.u32 %s0, 4
      %s37 = int_to_ptr.hbm [resolvable:$true] %s36
      %s38 = sshll.u32 [#allocation2], 4
      %s39 = int_to_ptr.vmem [resolvable:$true] %s38
      %41 = dma.hbm_to_vmem [thread:$0]  %s37, 512, %s39, [#allocation3]
    $region5: #{vae_forward_fused.1} parent=1 // pred_fallthru
      _
    // Predicated region
    $region6: #{vae_forward_fused.1} parent=1 // pred_check
      _
    $region7: #{vae_forward_fused.1} parent=1 // pred_check_branch
      %43 = sbr.rel (0) target = $region9
    $region8: #{vae_forward_fused.1} parent=1 // pred_region
      _
    $region9: #{vae_forward_fused.1} parent=1 // pred_fallthru
      _
    // Predicated region
    $region10: #{vae_forward_fused.1} parent=1 // pred_check
      _
    $region11: #{vae_forward_fused.1} parent=1 // pred_check_branch
      %45 = sbr.rel (0) target = $region13
    $region12: #{vae_forward_fused.1} parent=1 // pred_region
      %47 = vsyncadd [#allocation6], 0
      %s48 = sshll.u32 %s2, 4
      %s49 = int_to_ptr.hbm [resolvable:$true] %s48
      %s50 = sshll.u32 [#allocation5], 4
      %s51 = int_to_ptr.vmem [resolvable:$true] %s50
      %56 = dma.hbm_to_vmem [thread:$0]  %s49, 16384, %s51, [#allocation6], 256, 256, 16
    $region13: #{vae_forward_fused.1} parent=1 // pred_fallthru
      _
    // Predicated region
    $region14: #{vae_forward_fused.1} parent=1 // pred_check
      _
    $region15: #{vae_forward_fused.1} parent=1 // pred_check_branch
      %58 = sbr.rel (0) target = $region17
    $region16: #{vae_forward_fused.1} parent=1 // pred_region
      %60 = vsyncadd [#allocation6], 0
      %s62 = sshll.u32 %s3, 4
      %s63 = int_to_ptr.hbm [resolvable:$true] %s62
      %s64 = sshll.u32 [#allocation7], 4
      %s65 = int_to_ptr.vmem [resolvable:$true] %s64
      %67 = dma.hbm_to_vmem [thread:$0]  %s63, 32, %s65, [#allocation6]
    $region17: #{vae_forward_fused.1} parent=1 // pred_fallthru
      _
    // Predicated region
    $region18: #{vae_forward_fused.1} parent=1 // pred_check
      _
    $region19: #{vae_forward_fused.1} parent=1 // pred_check_branch
      %69 = sbr.rel (0) target = $region21
    $region20: #{vae_forward_fused.1} parent=1 // pred_region
      %71 = vsyncadd [#allocation9], 0
      %s72 = sshll.u32 %s4, 4
      %s73 = int_to_ptr.hbm [resolvable:$true] %s72
      %s74 = sshll.u32 [#allocation8], 4
      %s75 = int_to_ptr.vmem [resolvable:$true] %s74
      %80 = dma.hbm_to_vmem [thread:$0]  %s73, 8192, %s75, [#allocation9], 256, 256, 16
    $region21: #{vae_forward_fused.1} parent=1 // pred_fallthru
      _
    // Predicated region
    $region22: #{vae_forward_fused.1} parent=1 // pred_check
      _
    $region23: #{vae_forward_fused.1} parent=1 // pred_check_branch
      %82 = sbr.rel (0) target = $region25
    $region24: #{vae_forward_fused.1} parent=1 // pred_region
      %84 = vsyncadd [#allocation9], 0
      %s86 = sshll.u32 %s5, 4
      %s87 = int_to_ptr.hbm [resolvable:$true] %s86
      %s88 = sshll.u32 [#allocation10], 4
      %s89 = int_to_ptr.vmem [resolvable:$true] %s88
      %91 = dma.hbm_to_vmem [thread:$0]  %s87, 32, %s89, [#allocation9]
    $region25: #{vae_forward_fused.1} parent=1 // pred_fallthru
      _
    // Predicated region
    $region26: #{vae_forward_fused.1} parent=1 // pred_check
      _
    $region27: #{vae_forward_fused.1} parent=1 // pred_check_branch
      %93 = sbr.rel (0) target = $region29
    $region28: #{vae_forward_fused.1} parent=1 // pred_region
      %95 = vsyncadd [#allocation12], 0
      %s96 = sshll.u32 %s6, 4
      %s97 = int_to_ptr.hbm [resolvable:$true] %s96
      %s98 = sshll.u32 [#allocation11], 4
      %s99 = int_to_ptr.vmem [resolvable:$true] %s98
      %104 = dma.hbm_to_vmem [thread:$0]  %s97, 4096, %s99, [#allocation12], 128, 128, 8
    $region29: #{vae_forward_fused.1} parent=1 // pred_fallthru
      _
    // Predicated region
    $region30: #{vae_forward_fused.1} parent=1 // pred_check
      _
    $region31: #{vae_forward_fused.1} parent=1 // pred_check_branch
      %106 = sbr.rel (0) target = $region33
    $region32: #{vae_forward_fused.1} parent=1 // pred_region
      %108 = vsyncadd [#allocation12], 0
      %s110 = sshll.u32 %s7, 4
      %s111 = int_to_ptr.hbm [resolvable:$true] %s110
      %s112 = sshll.u32 [#allocation13], 4
      %s113 = int_to_ptr.vmem [resolvable:$true] %s112
      %115 = dma.hbm_to_vmem [thread:$0]  %s111, 16, %s113, [#allocation12]
    $region33: #{vae_forward_fused.1} parent=1 // pred_fallthru
      _
    // Predicated region
    $region34: #{vae_forward_fused.1} parent=1 // pred_check
      _
    $region35: #{vae_forward_fused.1} parent=1 // pred_check_branch
      %117 = sbr.rel (0) target = $region37
    $region36: #{vae_forward_fused.1} parent=1 // pred_region
      %119 = vsyncadd [#allocation15], 0
      %s120 = sshll.u32 %s8, 4
      %s121 = int_to_ptr.hbm [resolvable:$true] %s120
      %s122 = sshll.u32 [#allocation14], 4
      %s123 = int_to_ptr.vmem [resolvable:$true] %s122
      %128 = dma.hbm_to_vmem [thread:$0]  %s121, 2048, %s123, [#allocation15], 256, 256, 16
    $region37: #{vae_forward_fused.1} parent=1 // pred_fallthru
      _
    // Predicated region
    $region38: #{vae_forward_fused.1} parent=1 // pred_check
      _
    $region39: #{vae_forward_fused.1} parent=1 // pred_check_branch
      %130 = sbr.rel (0) target = $region41
    $region40: #{vae_forward_fused.1} parent=1 // pred_region
      %132 = vsyncadd [#allocation15], 0
      %s134 = sshll.u32 %s9, 4
      %s135 = int_to_ptr.hbm [resolvable:$true] %s134
      %s136 = sshll.u32 [#allocation16], 4
      %s137 = int_to_ptr.vmem [resolvable:$true] %s136
      %139 = dma.hbm_to_vmem [thread:$0]  %s135, 32, %s137, [#allocation15]
    $region41: #{vae_forward_fused.1} parent=1 // pred_fallthru
      _
    // Predicated region
    $region42: #{vae_forward_fused.1} parent=1 // pred_check
      _
    $region43: #{vae_forward_fused.1} parent=1 // pred_check_branch
      %141 = sbr.rel (0) target = $region45
    $region44: #{vae_forward_fused.1} parent=1 // pred_region
      %143 = vsyncadd [#allocation18], 0
      %s144 = sshll.u32 %s10, 4
      %s145 = int_to_ptr.hbm [resolvable:$true] %s144
      %s146 = sshll.u32 [#allocation17], 4
      %s147 = int_to_ptr.vmem [resolvable:$true] %s146
      %152 = dma.hbm_to_vmem [thread:$0]  %s145, 8192, %s147, [#allocation18], 256, 256, 16
    $region45: #{vae_forward_fused.1} parent=1 // pred_fallthru
      _
    // Predicated region
    $region46: #{vae_forward_fused.1} parent=1 // pred_check
      _
    $region47: #{vae_forward_fused.1} parent=1 // pred_check_branch
      %154 = sbr.rel (0) target = $region49
    $region48: #{vae_forward_fused.1} parent=1 // pred_region
      %156 = vsyncadd [#allocation18], 0
      %s158 = sshll.u32 %s11, 4
      %s159 = int_to_ptr.hbm [resolvable:$true] %s158
      %s160 = sshll.u32 [#allocation19], 4
      %s161 = int_to_ptr.vmem [resolvable:$true] %s160
      %163 = dma.hbm_to_vmem [thread:$0]  %s159, 32, %s161, [#allocation18]
    $region49: #{vae_forward_fused.1} parent=1 // pred_fallthru
      _
    // Predicated region
    $region50: #{vae_forward_fused.1} parent=1 // pred_check
      _
    $region51: #{vae_forward_fused.1} parent=1 // pred_check_branch
      %165 = sbr.rel (0) target = $region53
    $region52: #{vae_forward_fused.1} parent=1 // pred_region
      %167 = vsyncadd [#allocation21], 0
      %s168 = sshll.u32 %s12, 4
      %s169 = int_to_ptr.hbm [resolvable:$true] %s168
      %s170 = sshll.u32 [#allocation20], 4
      %s171 = int_to_ptr.vmem [resolvable:$true] %s170
      %176 = dma.hbm_to_vmem [thread:$0]  %s169, 16384, %s171, [#allocation21], 512, 512, 32
    $region53: #{vae_forward_fused.1} parent=1 // pred_fallthru
      _
    // Predicated region
    $region54: #{vae_forward_fused.1} parent=1 // pred_check
      _
    $region55: #{vae_forward_fused.1} parent=1 // pred_check_branch
      %178 = sbr.rel (0) target = $region57
    $region56: #{vae_forward_fused.1} parent=1 // pred_region
      _
    $region57: #{vae_forward_fused.1} parent=1 // pred_fallthru
      _
    // Predicated region
    $region58: #{vae_forward_fused.1} parent=1 // pred_check
      _
    $region59: #{vae_forward_fused.1} parent=1 // pred_check_branch
      %180 = sbr.rel (0) target = $region61
    $region60: #{vae_forward_fused.1} parent=1 // pred_region
      %182 = dma.done [#allocation3], 512
    $region61: #{vae_forward_fused.1} parent=1 // pred_fallthru
      _
    // Predicated region
    $region62: #{vae_forward_fused.1} parent=1 // pred_check
      _
    $region63: #{vae_forward_fused.1} parent=1 // pred_check_branch
      %184 = sbr.rel (0) target = $region65
    $region64: #{vae_forward_fused.1} parent=1 // pred_region
      %186 = dma.done [#allocation6], 16384
    $region65: #{vae_forward_fused.1} parent=1 // pred_fallthru
      _
    // Predicated region
    $region66: #{vae_forward_fused.1} parent=1 // pred_check
      _
    $region67: #{vae_forward_fused.1} parent=1 // pred_check_branch
      %188 = sbr.rel (0) target = $region69
    $region68: #{vae_forward_fused.1} parent=1 // pred_region
      %190 = dma.done [#allocation6], 32
    $region69: #{vae_forward_fused.1} parent=1 // pred_fallthru
      _
    // Predicated region
    $region70: #{vae_forward_fused.1} parent=1 // pred_check
      _
    $region71: #{vae_forward_fused.1} parent=1 // pred_check_branch
      %192 = sbr.rel (0) target = $region73
    $region72: #{vae_forward_fused.1} parent=1 // pred_region
      %194 = dma.done [#allocation9], 8192
    $region73: #{vae_forward_fused.1} parent=1 // pred_fallthru
      _
    // Predicated region
    $region74: #{vae_forward_fused.1} parent=1 // pred_check
      _
    $region75: #{vae_forward_fused.1} parent=1 // pred_check_branch
      %196 = sbr.rel (0) target = $region77
    $region76: #{vae_forward_fused.1} parent=1 // pred_region
      %198 = dma.done [#allocation9], 32
    $region77: #{vae_forward_fused.1} parent=1 // pred_fallthru
      _
    // Predicated region
    $region78: #{vae_forward_fused.1} parent=1 // pred_check
      _
    $region79: #{vae_forward_fused.1} parent=1 // pred_check_branch
      %200 = sbr.rel (0) target = $region81
    $region80: #{vae_forward_fused.1} parent=1 // pred_region
      %202 = dma.done [#allocation12], 4096
    $region81: #{vae_forward_fused.1} parent=1 // pred_fallthru
      _
    // Predicated region
    $region82: #{vae_forward_fused.1} parent=1 // pred_check
      _
    $region83: #{vae_forward_fused.1} parent=1 // pred_check_branch
      %204 = sbr.rel (0) target = $region85
    $region84: #{vae_forward_fused.1} parent=1 // pred_region
      %206 = dma.done [#allocation12], 16
    $region85: #{vae_forward_fused.1} parent=1 // pred_fallthru
      _
    // Predicated region
    $region86: #{vae_forward_fused.1} parent=1 // pred_check
      _
    $region87: #{vae_forward_fused.1} parent=1 // pred_check_branch
      %208 = sbr.rel (0) target = $region89
    $region88: #{vae_forward_fused.1} parent=1 // pred_region
      %210 = dma.done [#allocation15], 2048
    $region89: #{vae_forward_fused.1} parent=1 // pred_fallthru
      _
    // Predicated region
    $region90: #{vae_forward_fused.1} parent=1 // pred_check
      _
    $region91: #{vae_forward_fused.1} parent=1 // pred_check_branch
      %212 = sbr.rel (0) target = $region93
    $region92: #{vae_forward_fused.1} parent=1 // pred_region
      %214 = dma.done [#allocation15], 32
    $region93: #{vae_forward_fused.1} parent=1 // pred_fallthru
      _
    // Predicated region
    $region94: #{vae_forward_fused.1} parent=1 // pred_check
      _
    $region95: #{vae_forward_fused.1} parent=1 // pred_check_branch
      %216 = sbr.rel (0) target = $region97
    $region96: #{vae_forward_fused.1} parent=1 // pred_region
      %218 = dma.done [#allocation18], 8192
    $region97: #{vae_forward_fused.1} parent=1 // pred_fallthru
      _
    // Predicated region
    $region98: #{vae_forward_fused.1} parent=1 // pred_check
      _
    $region99: #{vae_forward_fused.1} parent=1 // pred_check_branch
      %220 = sbr.rel (0) target = $region101
    $region100: #{vae_forward_fused.1} parent=1 // pred_region
      %222 = dma.done [#allocation18], 32
    $region101: #{vae_forward_fused.1} parent=1 // pred_fallthru
      _
    // Predicated region
    $region102: #{vae_forward_fused.1} parent=1 // pred_check
      _
    $region103: #{vae_forward_fused.1} parent=1 // pred_check_branch
      %224 = sbr.rel (0) target = $region105
    $region104: #{vae_forward_fused.1} parent=1 // pred_region
      %226 = dma.done [#allocation21], 16384
    $region105: #{vae_forward_fused.1} parent=1 // pred_fallthru
      _
    %v227 = vld [vmem:[#allocation2] sm:$0xff]
    %v228 = vld [vmem:[#allocation2 + $0x8] sm:$0xff]
    %v229 = vld [vmem:[#allocation2 + $0x10] sm:$0xff]
    %v230 = vld [vmem:[#allocation2 + $0x18] sm:$0xff]
    %v231 = vld [vmem:[#allocation5] sm:$0xff]
    %v232 = vld [vmem:[#allocation5 + $0x8] sm:$0xff]
    %v233 = vld [vmem:[#allocation5 + $0x10] sm:$0xff]
    %v234 = vld [vmem:[#allocation5 + $0x18] sm:$0xff]
    %v235 = vld [vmem:[#allocation5 + $0x20] sm:$0xff]
    %v236 = vld [vmem:[#allocation5 + $0x28] sm:$0xff]
    %v237 = vld [vmem:[#allocation5 + $0x30] sm:$0xff]
    %v238 = vld [vmem:[#allocation5 + $0x38] sm:$0xff]
    %v239 = vld [vmem:[#allocation5 + $0x40] sm:$0xff]
    %v240 = vld [vmem:[#allocation5 + $0x48] sm:$0xff]
    %v241 = vld [vmem:[#allocation5 + $0x50] sm:$0xff]
    %v242 = vld [vmem:[#allocation5 + $0x58] sm:$0xff]
    %v243 = vld [vmem:[#allocation5 + $0x60] sm:$0xff]
    %v244 = vld [vmem:[#allocation5 + $0x68] sm:$0xff]
    %v245 = vld [vmem:[#allocation5 + $0x70] sm:$0xff]
    %v246 = vld [vmem:[#allocation5 + $0x78] sm:$0xff]
    %v247 = vld [vmem:[#allocation5 + $0x80] sm:$0xff]
    %v248 = vld [vmem:[#allocation5 + $0x88] sm:$0xff]
    %v249 = vld [vmem:[#allocation5 + $0x90] sm:$0xff]
    %v250 = vld [vmem:[#allocation5 + $0x98] sm:$0xff]
    %v251 = vld [vmem:[#allocation5 + $0xa0] sm:$0xff]
    %v252 = vld [vmem:[#allocation5 + $0xa8] sm:$0xff]
    %v253 = vld [vmem:[#allocation5 + $0xb0] sm:$0xff]
    %v254 = vld [vmem:[#allocation5 + $0xb8] sm:$0xff]
    %v255 = vld [vmem:[#allocation5 + $0xc0] sm:$0xff]
    %v256 = vld [vmem:[#allocation5 + $0xc8] sm:$0xff]
    %v257 = vld [vmem:[#allocation5 + $0xd0] sm:$0xff]
    %v258 = vld [vmem:[#allocation5 + $0xd8] sm:$0xff]
    %v259 = vld [vmem:[#allocation5 + $0xe0] sm:$0xff]
    %v260 = vld [vmem:[#allocation5 + $0xe8] sm:$0xff]
    %v261 = vld [vmem:[#allocation5 + $0xf0] sm:$0xff]
    %v262 = vld [vmem:[#allocation5 + $0xf8] sm:$0xff]
    %v263 = vld [vmem:[#allocation5 + $0x100] sm:$0xff]
    %v264 = vld [vmem:[#allocation5 + $0x108] sm:$0xff]
    %v265 = vld [vmem:[#allocation5 + $0x110] sm:$0xff]
    %v266 = vld [vmem:[#allocation5 + $0x118] sm:$0xff]
    %v267 = vld [vmem:[#allocation5 + $0x120] sm:$0xff]
    %v268 = vld [vmem:[#allocation5 + $0x128] sm:$0xff]
    %v269 = vld [vmem:[#allocation5 + $0x130] sm:$0xff]
    %v270 = vld [vmem:[#allocation5 + $0x138] sm:$0xff]
    %v271 = vld [vmem:[#allocation5 + $0x140] sm:$0xff]
    %v272 = vld [vmem:[#allocation5 + $0x148] sm:$0xff]
    %v273 = vld [vmem:[#allocation5 + $0x150] sm:$0xff]
    %v274 = vld [vmem:[#allocation5 + $0x158] sm:$0xff]
    %v275 = vld [vmem:[#allocation5 + $0x160] sm:$0xff]
    %v276 = vld [vmem:[#allocation5 + $0x168] sm:$0xff]
    %v277 = vld [vmem:[#allocation5 + $0x170] sm:$0xff]
    %v278 = vld [vmem:[#allocation5 + $0x178] sm:$0xff]
    %v279 = vld [vmem:[#allocation5 + $0x180] sm:$0xff]
    %v280 = vld [vmem:[#allocation5 + $0x188] sm:$0xff]
    %v281 = vld [vmem:[#allocation5 + $0x190] sm:$0xff]
    %v282 = vld [vmem:[#allocation5 + $0x198] sm:$0xff]
    %v283 = vld [vmem:[#allocation5 + $0x1a0] sm:$0xff]
    %v284 = vld [vmem:[#allocation5 + $0x1a8] sm:$0xff]
    %v285 = vld [vmem:[#allocation5 + $0x1b0] sm:$0xff]
    %v286 = vld [vmem:[#allocation5 + $0x1b8] sm:$0xff]
    %v287 = vld [vmem:[#allocation5 + $0x1c0] sm:$0xff]
    %v288 = vld [vmem:[#allocation5 + $0x1c8] sm:$0xff]
    %v289 = vld [vmem:[#allocation5 + $0x1d0] sm:$0xff]
    %v290 = vld [vmem:[#allocation5 + $0x1d8] sm:$0xff]
    %v291 = vld [vmem:[#allocation5 + $0x1e0] sm:$0xff]
    %v292 = vld [vmem:[#allocation5 + $0x1e8] sm:$0xff]
    %v293 = vld [vmem:[#allocation5 + $0x1f0] sm:$0xff]
    %v294 = vld [vmem:[#allocation5 + $0x1f8] sm:$0xff]
    %v295 = vld [vmem:[#allocation5 + $0x200] sm:$0xff]
    %v296 = vld [vmem:[#allocation5 + $0x208] sm:$0xff]
    %v297 = vld [vmem:[#allocation5 + $0x210] sm:$0xff]
    %v298 = vld [vmem:[#allocation5 + $0x218] sm:$0xff]
    %v299 = vld [vmem:[#allocation5 + $0x220] sm:$0xff]
    %v300 = vld [vmem:[#allocation5 + $0x228] sm:$0xff]
    %v301 = vld [vmem:[#allocation5 + $0x230] sm:$0xff]
    %v302 = vld [vmem:[#allocation5 + $0x238] sm:$0xff]
    %v303 = vld [vmem:[#allocation5 + $0x240] sm:$0xff]
    %v304 = vld [vmem:[#allocation5 + $0x248] sm:$0xff]
    %v305 = vld [vmem:[#allocation5 + $0x250] sm:$0xff]
    %v306 = vld [vmem:[#allocation5 + $0x258] sm:$0xff]
    %v307 = vld [vmem:[#allocation5 + $0x260] sm:$0xff]
    %v308 = vld [vmem:[#allocation5 + $0x268] sm:$0xff]
    %v309 = vld [vmem:[#allocation5 + $0x270] sm:$0xff]
    %v310 = vld [vmem:[#allocation5 + $0x278] sm:$0xff]
    %v311 = vld [vmem:[#allocation5 + $0x280] sm:$0xff]
    %v312 = vld [vmem:[#allocation5 + $0x288] sm:$0xff]
    %v313 = vld [vmem:[#allocation5 + $0x290] sm:$0xff]
    %v314 = vld [vmem:[#allocation5 + $0x298] sm:$0xff]
    %v315 = vld [vmem:[#allocation5 + $0x2a0] sm:$0xff]
    %v316 = vld [vmem:[#allocation5 + $0x2a8] sm:$0xff]
    %v317 = vld [vmem:[#allocation5 + $0x2b0] sm:$0xff]
    %v318 = vld [vmem:[#allocation5 + $0x2b8] sm:$0xff]
    %v319 = vld [vmem:[#allocation5 + $0x2c0] sm:$0xff]
    %v320 = vld [vmem:[#allocation5 + $0x2c8] sm:$0xff]
    %v321 = vld [vmem:[#allocation5 + $0x2d0] sm:$0xff]
    %v322 = vld [vmem:[#allocation5 + $0x2d8] sm:$0xff]
    %v323 = vld [vmem:[#allocation5 + $0x2e0] sm:$0xff]
    %v324 = vld [vmem:[#allocation5 + $0x2e8] sm:$0xff]
    %v325 = vld [vmem:[#allocation5 + $0x2f0] sm:$0xff]
    %v326 = vld [vmem:[#allocation5 + $0x2f8] sm:$0xff]
    %v327 = vld [vmem:[#allocation5 + $0x300] sm:$0xff]
    %v328 = vld [vmem:[#allocation5 + $0x308] sm:$0xff]
    %v329 = vld [vmem:[#allocation5 + $0x310] sm:$0xff]
    %v330 = vld [vmem:[#allocation5 + $0x318] sm:$0xff]
    %v331 = vld [vmem:[#allocation5 + $0x320] sm:$0xff]
    %v332 = vld [vmem:[#allocation5 + $0x328] sm:$0xff]
    %v333 = vld [vmem:[#allocation5 + $0x330] sm:$0xff]
    %v334 = vld [vmem:[#allocation5 + $0x338] sm:$0xff]
    %v335 = vld [vmem:[#allocation5 + $0x340] sm:$0xff]
    %v336 = vld [vmem:[#allocation5 + $0x348] sm:$0xff]
    %v337 = vld [vmem:[#allocation5 + $0x350] sm:$0xff]
    %v338 = vld [vmem:[#allocation5 + $0x358] sm:$0xff]
    %v339 = vld [vmem:[#allocation5 + $0x360] sm:$0xff]
    %v340 = vld [vmem:[#allocation5 + $0x368] sm:$0xff]
    %v341 = vld [vmem:[#allocation5 + $0x370] sm:$0xff]
    %v342 = vld [vmem:[#allocation5 + $0x378] sm:$0xff]
    %v343 = vld [vmem:[#allocation5 + $0x380] sm:$0xff]
    %v344 = vld [vmem:[#allocation5 + $0x388] sm:$0xff]
    %v345 = vld [vmem:[#allocation5 + $0x390] sm:$0xff]
    %v346 = vld [vmem:[#allocation5 + $0x398] sm:$0xff]
    %v347 = vld [vmem:[#allocation5 + $0x3a0] sm:$0xff]
    %v348 = vld [vmem:[#allocation5 + $0x3a8] sm:$0xff]
    %v349 = vld [vmem:[#allocation5 + $0x3b0] sm:$0xff]
    %v350 = vld [vmem:[#allocation5 + $0x3b8] sm:$0xff]
    %v351 = vld [vmem:[#allocation5 + $0x3c0] sm:$0xff]
    %v352 = vld [vmem:[#allocation5 + $0x3c8] sm:$0xff]
    %v353 = vld [vmem:[#allocation5 + $0x3d0] sm:$0xff]
    %v354 = vld [vmem:[#allocation5 + $0x3d8] sm:$0xff]
    %v355 = vld [vmem:[#allocation5 + $0x3e0] sm:$0xff]
    %v356 = vld [vmem:[#allocation5 + $0x3e8] sm:$0xff]
    %v357 = vld [vmem:[#allocation5 + $0x3f0] sm:$0xff]
    %v358 = vld [vmem:[#allocation5 + $0x3f8] sm:$0xff]
    %v359 = vld [vmem:[#allocation7] sm:$0x3]
    %v361 = vperm.slane %v359, 0
    %v362 = vperm.slane %v359, 1
    %365 = vmatpush.msra.mxu0 %v261
    %366 = vmatpush.msra.mxu0 %v259
    %367 = vmatpush.msra.mxu0 %v257
    %368 = vmatpush.msra.mxu0 %v255
    %369 = vmatpush.msra.mxu0 %v253
    %370 = vmatpush.msra.mxu0 %v251
    %371 = vmatpush.msra.mxu0 %v249
    %372 = vmatpush.msra.mxu0 %v247
    %373 = vmatpush.msra.mxu0 %v245
    %374 = vmatpush.msra.mxu0 %v243
    %375 = vmatpush.msra.mxu0 %v241
    %376 = vmatpush.msra.mxu0 %v239
    %377 = vmatpush.msra.mxu0 %v237
    %378 = vmatpush.msra.mxu0 %v235
    %379 = vmatpush.msra.mxu0 %v233
    %380 = vmatpush.msra.mxu0 %v231
    %381 = vmatmul.f32.gmra.mxu0 %v227
    %v382 = vpop.f32.mrf.mxu0
    %v383 = vadd.f32 %v361, %v382
    %384 = vdwg.mxu0
    %385 = vmatpush.msra.mxu0 %v293
    %386 = vmatpush.msra.mxu0 %v291
    %387 = vmatpush.msra.mxu0 %v289
    %388 = vmatpush.msra.mxu0 %v287
    %389 = vmatpush.msra.mxu0 %v285
    %390 = vmatpush.msra.mxu0 %v283
    %391 = vmatpush.msra.mxu0 %v281
    %392 = vmatpush.msra.mxu0 %v279
    %393 = vmatpush.msra.mxu0 %v277
    %394 = vmatpush.msra.mxu0 %v275
    %395 = vmatpush.msra.mxu0 %v273
    %396 = vmatpush.msra.mxu0 %v271
    %397 = vmatpush.msra.mxu0 %v269
    %398 = vmatpush.msra.mxu0 %v267
    %399 = vmatpush.msra.mxu0 %v265
    %400 = vmatpush.msra.mxu0 %v263
    %401 = vmatmul.f32.gmra.mxu0 %v228
    %v402 = vpop.f32.mrf.mxu0
    %v403 = vadd.f32 %v383, %v402
    %404 = vdwg.mxu0
    %405 = vmatpush.msra.mxu0 %v325
    %406 = vmatpush.msra.mxu0 %v323
    %407 = vmatpush.msra.mxu0 %v321
    %408 = vmatpush.msra.mxu0 %v319
    %409 = vmatpush.msra.mxu0 %v317
    %410 = vmatpush.msra.mxu0 %v315
    %411 = vmatpush.msra.mxu0 %v313
    %412 = vmatpush.msra.mxu0 %v311
    %413 = vmatpush.msra.mxu0 %v309
    %414 = vmatpush.msra.mxu0 %v307
    %415 = vmatpush.msra.mxu0 %v305
    %416 = vmatpush.msra.mxu0 %v303
    %417 = vmatpush.msra.mxu0 %v301
    %418 = vmatpush.msra.mxu0 %v299
    %419 = vmatpush.msra.mxu0 %v297
    %420 = vmatpush.msra.mxu0 %v295
    %421 = vmatmul.f32.gmra.mxu0 %v229
    %v422 = vpop.f32.mrf.mxu0
    %v423 = vadd.f32 %v403, %v422
    %424 = vdwg.mxu0
    %425 = vmatpush.msra.mxu0 %v357
    %426 = vmatpush.msra.mxu0 %v355
    %427 = vmatpush.msra.mxu0 %v353
    %428 = vmatpush.msra.mxu0 %v351
    %429 = vmatpush.msra.mxu0 %v349
    %430 = vmatpush.msra.mxu0 %v347
    %431 = vmatpush.msra.mxu0 %v345
    %432 = vmatpush.msra.mxu0 %v343
    %433 = vmatpush.msra.mxu0 %v341
    %434 = vmatpush.msra.mxu0 %v339
    %435 = vmatpush.msra.mxu0 %v337
    %436 = vmatpush.msra.mxu0 %v335
    %437 = vmatpush.msra.mxu0 %v333
    %438 = vmatpush.msra.mxu0 %v331
    %439 = vmatpush.msra.mxu0 %v329
    %440 = vmatpush.msra.mxu0 %v327
    %441 = vmatmul.f32.gmra.mxu0 %v230
    %v442 = vpop.f32.mrf.mxu0
    %v443 = vadd.f32 %v423, %v442
    %444 = vdwg.mxu0
    %445 = vmatpush.msra.mxu0 %v262
    %446 = vmatpush.msra.mxu0 %v260
    %447 = vmatpush.msra.mxu0 %v258
    %448 = vmatpush.msra.mxu0 %v256
    %449 = vmatpush.msra.mxu0 %v254
    %450 = vmatpush.msra.mxu0 %v252
    %451 = vmatpush.msra.mxu0 %v250
    %452 = vmatpush.msra.mxu0 %v248
    %453 = vmatpush.msra.mxu0 %v246
    %454 = vmatpush.msra.mxu0 %v244
    %455 = vmatpush.msra.mxu0 %v242
    %456 = vmatpush.msra.mxu0 %v240
    %457 = vmatpush.msra.mxu0 %v238
    %458 = vmatpush.msra.mxu0 %v236
    %459 = vmatpush.msra.mxu0 %v234
    %460 = vmatpush.msra.mxu0 %v232
    %461 = vmatmul.f32.gmra.mxu0 %v227
    %v462 = vpop.f32.mrf.mxu0
    %v463 = vadd.f32 %v362, %v462
    %464 = vdwg.mxu0
    %465 = vmatpush.msra.mxu0 %v294
    %466 = vmatpush.msra.mxu0 %v292
    %467 = vmatpush.msra.mxu0 %v290
    %468 = vmatpush.msra.mxu0 %v288
    %469 = vmatpush.msra.mxu0 %v286
    %470 = vmatpush.msra.mxu0 %v284
    %471 = vmatpush.msra.mxu0 %v282
    %472 = vmatpush.msra.mxu0 %v280
    %473 = vmatpush.msra.mxu0 %v278
    %474 = vmatpush.msra.mxu0 %v276
    %475 = vmatpush.msra.mxu0 %v274
    %476 = vmatpush.msra.mxu0 %v272
    %477 = vmatpush.msra.mxu0 %v270
    %478 = vmatpush.msra.mxu0 %v268
    %479 = vmatpush.msra.mxu0 %v266
    %480 = vmatpush.msra.mxu0 %v264
    %481 = vmatmul.f32.gmra.mxu0 %v228
    %v482 = vpop.f32.mrf.mxu0
    %v483 = vadd.f32 %v463, %v482
    %484 = vdwg.mxu0
    %485 = vmatpush.msra.mxu0 %v326
    %486 = vmatpush.msra.mxu0 %v324
    %487 = vmatpush.msra.mxu0 %v322
    %488 = vmatpush.msra.mxu0 %v320
    %489 = vmatpush.msra.mxu0 %v318
    %490 = vmatpush.msra.mxu0 %v316
    %491 = vmatpush.msra.mxu0 %v314
    %492 = vmatpush.msra.mxu0 %v312
    %493 = vmatpush.msra.mxu0 %v310
    %494 = vmatpush.msra.mxu0 %v308
    %495 = vmatpush.msra.mxu0 %v306
    %496 = vmatpush.msra.mxu0 %v304
    %497 = vmatpush.msra.mxu0 %v302
    %498 = vmatpush.msra.mxu0 %v300
    %499 = vmatpush.msra.mxu0 %v298
    %500 = vmatpush.msra.mxu0 %v296
    %501 = vmatmul.f32.gmra.mxu0 %v229
    %v502 = vpop.f32.mrf.mxu0
    %v503 = vadd.f32 %v483, %v502
    %504 = vdwg.mxu0
    %505 = vmatpush.msra.mxu0 %v358
    %506 = vmatpush.msra.mxu0 %v356
    %507 = vmatpush.msra.mxu0 %v354
    %508 = vmatpush.msra.mxu0 %v352
    %509 = vmatpush.msra.mxu0 %v350
    %510 = vmatpush.msra.mxu0 %v348
    %511 = vmatpush.msra.mxu0 %v346
    %512 = vmatpush.msra.mxu0 %v344
    %513 = vmatpush.msra.mxu0 %v342
    %514 = vmatpush.msra.mxu0 %v340
    %515 = vmatpush.msra.mxu0 %v338
    %516 = vmatpush.msra.mxu0 %v336
    %517 = vmatpush.msra.mxu0 %v334
    %518 = vmatpush.msra.mxu0 %v332
    %519 = vmatpush.msra.mxu0 %v330
    %520 = vmatpush.msra.mxu0 %v328
    %521 = vmatmul.f32.gmra.mxu0 %v230
    %v522 = vpop.f32.mrf.mxu0
    %v523 = vadd.f32 %v503, %v522
    %524 = vdwg.mxu0
    %v525 = vld [vmem:[#allocation8] sm:$0xff]
    %v526 = vld [vmem:[#allocation8 + $0x8] sm:$0xff]
    %v527 = vld [vmem:[#allocation8 + $0x10] sm:$0xff]
    %v528 = vld [vmem:[#allocation8 + $0x18] sm:$0xff]
    %v529 = vld [vmem:[#allocation8 + $0x20] sm:$0xff]
    %v530 = vld [vmem:[#allocation8 + $0x28] sm:$0xff]
    %v531 = vld [vmem:[#allocation8 + $0x30] sm:$0xff]
    %v532 = vld [vmem:[#allocation8 + $0x38] sm:$0xff]
    %v533 = vld [vmem:[#allocation8 + $0x40] sm:$0xff]
    %v534 = vld [vmem:[#allocation8 + $0x48] sm:$0xff]
    %v535 = vld [vmem:[#allocation8 + $0x50] sm:$0xff]
    %v536 = vld [vmem:[#allocation8 + $0x58] sm:$0xff]
    %v537 = vld [vmem:[#allocation8 + $0x60] sm:$0xff]
    %v538 = vld [vmem:[#allocation8 + $0x68] sm:$0xff]
    %v539 = vld [vmem:[#allocation8 + $0x70] sm:$0xff]
    %v540 = vld [vmem:[#allocation8 + $0x78] sm:$0xff]
    %v541 = vld [vmem:[#allocation8 + $0x80] sm:$0xff]
    %v542 = vld [vmem:[#allocation8 + $0x88] sm:$0xff]
    %v543 = vld [vmem:[#allocation8 + $0x90] sm:$0xff]
    %v544 = vld [vmem:[#allocation8 + $0x98] sm:$0xff]
    %v545 = vld [vmem:[#allocation8 + $0xa0] sm:$0xff]
    %v546 = vld [vmem:[#allocation8 + $0xa8] sm:$0xff]
    %v547 = vld [vmem:[#allocation8 + $0xb0] sm:$0xff]
    %v548 = vld [vmem:[#allocation8 + $0xb8] sm:$0xff]
    %v549 = vld [vmem:[#allocation8 + $0xc0] sm:$0xff]
    %v550 = vld [vmem:[#allocation8 + $0xc8] sm:$0xff]
    %v551 = vld [vmem:[#allocation8 + $0xd0] sm:$0xff]
    %v552 = vld [vmem:[#allocation8 + $0xd8] sm:$0xff]
    %v553 = vld [vmem:[#allocation8 + $0xe0] sm:$0xff]
    %v554 = vld [vmem:[#allocation8 + $0xe8] sm:$0xff]
    %v555 = vld [vmem:[#allocation8 + $0xf0] sm:$0xff]
    %v556 = vld [vmem:[#allocation8 + $0xf8] sm:$0xff]
    %v557 = vld [vmem:[#allocation8 + $0x100] sm:$0xff]
    %v558 = vld [vmem:[#allocation8 + $0x108] sm:$0xff]
    %v559 = vld [vmem:[#allocation8 + $0x110] sm:$0xff]
    %v560 = vld [vmem:[#allocation8 + $0x118] sm:$0xff]
    %v561 = vld [vmem:[#allocation8 + $0x120] sm:$0xff]
    %v562 = vld [vmem:[#allocation8 + $0x128] sm:$0xff]
    %v563 = vld [vmem:[#allocation8 + $0x130] sm:$0xff]
    %v564 = vld [vmem:[#allocation8 + $0x138] sm:$0xff]
    %v565 = vld [vmem:[#allocation8 + $0x140] sm:$0xff]
    %v566 = vld [vmem:[#allocation8 + $0x148] sm:$0xff]
    %v567 = vld [vmem:[#allocation8 + $0x150] sm:$0xff]
    %v568 = vld [vmem:[#allocation8 + $0x158] sm:$0xff]
    %v569 = vld [vmem:[#allocation8 + $0x160] sm:$0xff]
    %v570 = vld [vmem:[#allocation8 + $0x168] sm:$0xff]
    %v571 = vld [vmem:[#allocation8 + $0x170] sm:$0xff]
    %v572 = vld [vmem:[#allocation8 + $0x178] sm:$0xff]
    %v573 = vld [vmem:[#allocation8 + $0x180] sm:$0xff]
    %v574 = vld [vmem:[#allocation8 + $0x188] sm:$0xff]
    %v575 = vld [vmem:[#allocation8 + $0x190] sm:$0xff]
    %v576 = vld [vmem:[#allocation8 + $0x198] sm:$0xff]
    %v577 = vld [vmem:[#allocation8 + $0x1a0] sm:$0xff]
    %v578 = vld [vmem:[#allocation8 + $0x1a8] sm:$0xff]
    %v579 = vld [vmem:[#allocation8 + $0x1b0] sm:$0xff]
    %v580 = vld [vmem:[#allocation8 + $0x1b8] sm:$0xff]
    %v581 = vld [vmem:[#allocation8 + $0x1c0] sm:$0xff]
    %v582 = vld [vmem:[#allocation8 + $0x1c8] sm:$0xff]
    %v583 = vld [vmem:[#allocation8 + $0x1d0] sm:$0xff]
    %v584 = vld [vmem:[#allocation8 + $0x1d8] sm:$0xff]
    %v585 = vld [vmem:[#allocation8 + $0x1e0] sm:$0xff]
    %v586 = vld [vmem:[#allocation8 + $0x1e8] sm:$0xff]
    %v587 = vld [vmem:[#allocation8 + $0x1f0] sm:$0xff]
    %v588 = vld [vmem:[#allocation8 + $0x1f8] sm:$0xff]
    %v589 = vld [vmem:[#allocation10] sm:$0x3]
    %v591 = vperm.slane %v589, 0
    %v592 = vperm.slane %v589, 1
    %595 = vmatpush.msra.mxu0 %v555
    %596 = vmatpush.msra.mxu0 %v553
    %597 = vmatpush.msra.mxu0 %v551
    %598 = vmatpush.msra.mxu0 %v549
    %599 = vmatpush.msra.mxu0 %v547
    %600 = vmatpush.msra.mxu0 %v545
    %601 = vmatpush.msra.mxu0 %v543
    %602 = vmatpush.msra.mxu0 %v541
    %603 = vmatpush.msra.mxu0 %v539
    %604 = vmatpush.msra.mxu0 %v537
    %605 = vmatpush.msra.mxu0 %v535
    %606 = vmatpush.msra.mxu0 %v533
    %607 = vmatpush.msra.mxu0 %v531
    %608 = vmatpush.msra.mxu0 %v529
    %609 = vmatpush.msra.mxu0 %v527
    %610 = vmatpush.msra.mxu0 %v525
    %611 = vmatmul.f32.gmra.mxu0 %v443
    %v612 = vpop.f32.mrf.mxu0
    %v613 = vadd.f32 %v591, %v612
    %614 = vdwg.mxu0
    %615 = vmatpush.msra.mxu0 %v587
    %616 = vmatpush.msra.mxu0 %v585
    %617 = vmatpush.msra.mxu0 %v583
    %618 = vmatpush.msra.mxu0 %v581
    %619 = vmatpush.msra.mxu0 %v579
    %620 = vmatpush.msra.mxu0 %v577
    %621 = vmatpush.msra.mxu0 %v575
    %622 = vmatpush.msra.mxu0 %v573
    %623 = vmatpush.msra.mxu0 %v571
    %624 = vmatpush.msra.mxu0 %v569
    %625 = vmatpush.msra.mxu0 %v567
    %626 = vmatpush.msra.mxu0 %v565
    %627 = vmatpush.msra.mxu0 %v563
    %628 = vmatpush.msra.mxu0 %v561
    %629 = vmatpush.msra.mxu0 %v559
    %630 = vmatpush.msra.mxu0 %v557
    %631 = vmatmul.f32.gmra.mxu0 %v523
    %v632 = vpop.f32.mrf.mxu0
    %v633 = vadd.f32 %v613, %v632
    %634 = vdwg.mxu0
    %635 = vmatpush.msra.mxu0 %v556
    %636 = vmatpush.msra.mxu0 %v554
    %637 = vmatpush.msra.mxu0 %v552
    %638 = vmatpush.msra.mxu0 %v550
    %639 = vmatpush.msra.mxu0 %v548
    %640 = vmatpush.msra.mxu0 %v546
    %641 = vmatpush.msra.mxu0 %v544
    %642 = vmatpush.msra.mxu0 %v542
    %643 = vmatpush.msra.mxu0 %v540
    %644 = vmatpush.msra.mxu0 %v538
    %645 = vmatpush.msra.mxu0 %v536
    %646 = vmatpush.msra.mxu0 %v534
    %647 = vmatpush.msra.mxu0 %v532
    %648 = vmatpush.msra.mxu0 %v530
    %649 = vmatpush.msra.mxu0 %v528
    %650 = vmatpush.msra.mxu0 %v526
    %651 = vmatmul.f32.gmra.mxu0 %v443
    %v652 = vpop.f32.mrf.mxu0
    %v653 = vadd.f32 %v592, %v652
    %654 = vdwg.mxu0
    %655 = vmatpush.msra.mxu0 %v588
    %656 = vmatpush.msra.mxu0 %v586
    %657 = vmatpush.msra.mxu0 %v584
    %658 = vmatpush.msra.mxu0 %v582
    %659 = vmatpush.msra.mxu0 %v580
    %660 = vmatpush.msra.mxu0 %v578
    %661 = vmatpush.msra.mxu0 %v576
    %662 = vmatpush.msra.mxu0 %v574
    %663 = vmatpush.msra.mxu0 %v572
    %664 = vmatpush.msra.mxu0 %v570
    %665 = vmatpush.msra.mxu0 %v568
    %666 = vmatpush.msra.mxu0 %v566
    %667 = vmatpush.msra.mxu0 %v564
    %668 = vmatpush.msra.mxu0 %v562
    %669 = vmatpush.msra.mxu0 %v560
    %670 = vmatpush.msra.mxu0 %v558
    %671 = vmatmul.f32.gmra.mxu0 %v523
    %v672 = vpop.f32.mrf.mxu0
    %v673 = vadd.f32 %v653, %v672
    %674 = vdwg.mxu0
    %v675 = vmax.f32 %v633, 0.0
    %v676 = vmax.f32 %v673, 0.0
    %v677 = vld [vmem:[#allocation11] sm:$0xff]
    %v678 = vld [vmem:[#allocation11 + $0x8] sm:$0xff]
    %v679 = vld [vmem:[#allocation11 + $0x10] sm:$0xff]
    %v680 = vld [vmem:[#allocation11 + $0x18] sm:$0xff]
    %v681 = vld [vmem:[#allocation11 + $0x20] sm:$0xff]
    %v682 = vld [vmem:[#allocation11 + $0x28] sm:$0xff]
    %v683 = vld [vmem:[#allocation11 + $0x30] sm:$0xff]
    %v684 = vld [vmem:[#allocation11 + $0x38] sm:$0xff]
    %v685 = vld [vmem:[#allocation11 + $0x40] sm:$0xff]
    %v686 = vld [vmem:[#allocation11 + $0x48] sm:$0xff]
    %v687 = vld [vmem:[#allocation11 + $0x50] sm:$0xff]
    %v688 = vld [vmem:[#allocation11 + $0x58] sm:$0xff]
    %v689 = vld [vmem:[#allocation11 + $0x60] sm:$0xff]
    %v690 = vld [vmem:[#allocation11 + $0x68] sm:$0xff]
    %v691 = vld [vmem:[#allocation11 + $0x70] sm:$0xff]
    %v692 = vld [vmem:[#allocation11 + $0x78] sm:$0xff]
    %v693 = vld [vmem:[#allocation11 + $0x80] sm:$0xff]
    %v694 = vld [vmem:[#allocation11 + $0x88] sm:$0xff]
    %v695 = vld [vmem:[#allocation11 + $0x90] sm:$0xff]
    %v696 = vld [vmem:[#allocation11 + $0x98] sm:$0xff]
    %v697 = vld [vmem:[#allocation11 + $0xa0] sm:$0xff]
    %v698 = vld [vmem:[#allocation11 + $0xa8] sm:$0xff]
    %v699 = vld [vmem:[#allocation11 + $0xb0] sm:$0xff]
    %v700 = vld [vmem:[#allocation11 + $0xb8] sm:$0xff]
    %v701 = vld [vmem:[#allocation11 + $0xc0] sm:$0xff]
    %v702 = vld [vmem:[#allocation11 + $0xc8] sm:$0xff]
    %v703 = vld [vmem:[#allocation11 + $0xd0] sm:$0xff]
    %v704 = vld [vmem:[#allocation11 + $0xd8] sm:$0xff]
    %v705 = vld [vmem:[#allocation11 + $0xe0] sm:$0xff]
    %v706 = vld [vmem:[#allocation11 + $0xe8] sm:$0xff]
    %v707 = vld [vmem:[#allocation11 + $0xf0] sm:$0xff]
    %v708 = vld [vmem:[#allocation11 + $0xf8] sm:$0xff]
    %v709 = vld [vmem:[#allocation13] sm:$0x1]
    %v711 = vperm.slane %v709, 0
    %713 = vmatpush.msra.mxu0 %v692
    %714 = vmatpush.msra.mxu0 %v691
    %715 = vmatpush.msra.mxu0 %v690
    %716 = vmatpush.msra.mxu0 %v689
    %717 = vmatpush.msra.mxu0 %v688
    %718 = vmatpush.msra.mxu0 %v687
    %719 = vmatpush.msra.mxu0 %v686
    %720 = vmatpush.msra.mxu0 %v685
    %721 = vmatpush.msra.mxu0 %v684
    %722 = vmatpush.msra.mxu0 %v683
    %723 = vmatpush.msra.mxu0 %v682
    %724 = vmatpush.msra.mxu0 %v681
    %725 = vmatpush.msra.mxu0 %v680
    %726 = vmatpush.msra.mxu0 %v679
    %727 = vmatpush.msra.mxu0 %v678
    %728 = vmatpush.msra.mxu0 %v677
    %729 = vmatmul.f32.gmra.mxu0 %v675
    %v730 = vpop.f32.mrf.mxu0
    %v731 = vadd.f32 %v711, %v730
    %732 = vdwg.mxu0
    %733 = vmatpush.msra.mxu0 %v708
    %734 = vmatpush.msra.mxu0 %v707
    %735 = vmatpush.msra.mxu0 %v706
    %736 = vmatpush.msra.mxu0 %v705
    %737 = vmatpush.msra.mxu0 %v704
    %738 = vmatpush.msra.mxu0 %v703
    %739 = vmatpush.msra.mxu0 %v702
    %740 = vmatpush.msra.mxu0 %v701
    %741 = vmatpush.msra.mxu0 %v700
    %742 = vmatpush.msra.mxu0 %v699
    %743 = vmatpush.msra.mxu0 %v698
    %744 = vmatpush.msra.mxu0 %v697
    %745 = vmatpush.msra.mxu0 %v696
    %746 = vmatpush.msra.mxu0 %v695
    %747 = vmatpush.msra.mxu0 %v694
    %748 = vmatpush.msra.mxu0 %v693
    %749 = vmatmul.f32.gmra.mxu0 %v676
    %v750 = vpop.f32.mrf.mxu0
    %v751 = vadd.f32 %v731, %v750
    %752 = vdwg.mxu0
    %v753 = vld [vmem:[%s1] sm:$0xff]
    %v754 = vmul.f32 %v751, 0.5
    %v755 = vmul.f32 %v754, 1.442695
    %v756 = vpow.pop %v755
    %758 = vrot.lane.b32.xlu0 %v756, 64
    %v759 = vpop.permute.xlu0 %758
    %v761 = vmul.f32 %v753, %v759
    %v762 = vadd.f32 %v751, %v761
    %v763 = vld [vmem:[#allocation14] sm:$0xff]
    %v764 = vld [vmem:[#allocation14 + $0x8] sm:$0xff]
    %v765 = vld [vmem:[#allocation14 + $0x10] sm:$0xff]
    %v766 = vld [vmem:[#allocation14 + $0x18] sm:$0xff]
    %v767 = vld [vmem:[#allocation14 + $0x20] sm:$0xff]
    %v768 = vld [vmem:[#allocation14 + $0x28] sm:$0xff]
    %v769 = vld [vmem:[#allocation14 + $0x30] sm:$0xff]
    %v770 = vld [vmem:[#allocation14 + $0x38] sm:$0xff]
    %v771 = vld [vmem:[#allocation14 + $0x40] sm:$0xff]
    %v772 = vld [vmem:[#allocation14 + $0x48] sm:$0xff]
    %v773 = vld [vmem:[#allocation14 + $0x50] sm:$0xff]
    %v774 = vld [vmem:[#allocation14 + $0x58] sm:$0xff]
    %v775 = vld [vmem:[#allocation14 + $0x60] sm:$0xff]
    %v776 = vld [vmem:[#allocation14 + $0x68] sm:$0xff]
    %v777 = vld [vmem:[#allocation14 + $0x70] sm:$0xff]
    %v778 = vld [vmem:[#allocation14 + $0x78] sm:$0xff]
    %v779 = vld [vmem:[#allocation16] sm:$0x3]
    %v781 = vperm.slane %v779, 0
    %v782 = vperm.slane %v779, 1
    %vm785 = vcmask 523264
    %v787 = vsel %vm785, %v762, 0
    %789 = vmatpush.msra.mxu0 0.0
    %790 = vmatpush.msra.mxu0 0.0
    %791 = vmatpush.msra.mxu0 0.0
    %792 = vmatpush.msra.mxu0 0.0
    %793 = vmatpush.msra.mxu0 0.0
    %794 = vmatpush.msra.mxu0 0.0
    %795 = vmatpush.msra.mxu0 0.0
    %796 = vmatpush.msra.mxu0 0.0
    %797 = vmatpush.msra.mxu0 %v777
    %798 = vmatpush.msra.mxu0 %v775
    %799 = vmatpush.msra.mxu0 %v773
    %800 = vmatpush.msra.mxu0 %v771
    %801 = vmatpush.msra.mxu0 %v769
    %802 = vmatpush.msra.mxu0 %v767
    %803 = vmatpush.msra.mxu0 %v765
    %804 = vmatpush.msra.mxu0 %v763
    %805 = vmatmul.f32.gmra.mxu0 %v787
    %v806 = vpop.f32.mrf.mxu0
    %v807 = vadd.f32 %v781, %v806
    %808 = vdwg.mxu0
    %809 = vmatpush.msra.mxu0 0.0
    %810 = vmatpush.msra.mxu0 0.0
    %811 = vmatpush.msra.mxu0 0.0
    %812 = vmatpush.msra.mxu0 0.0
    %813 = vmatpush.msra.mxu0 0.0
    %814 = vmatpush.msra.mxu0 0.0
    %815 = vmatpush.msra.mxu0 0.0
    %816 = vmatpush.msra.mxu0 0.0
    %817 = vmatpush.msra.mxu0 %v778
    %818 = vmatpush.msra.mxu0 %v776
    %819 = vmatpush.msra.mxu0 %v774
    %820 = vmatpush.msra.mxu0 %v772
    %821 = vmatpush.msra.mxu0 %v770
    %822 = vmatpush.msra.mxu0 %v768
    %823 = vmatpush.msra.mxu0 %v766
    %824 = vmatpush.msra.mxu0 %v764
    %825 = vmatmul.f32.gmra.mxu0 %v787
    %v826 = vpop.f32.mrf.mxu0
    %v827 = vadd.f32 %v782, %v826
    %828 = vdwg.mxu0
    %v829 = vld [vmem:[#allocation17] sm:$0xff]
    %v830 = vld [vmem:[#allocation17 + $0x8] sm:$0xff]
    %v831 = vld [vmem:[#allocation17 + $0x10] sm:$0xff]
    %v832 = vld [vmem:[#allocation17 + $0x18] sm:$0xff]
    %v833 = vld [vmem:[#allocation17 + $0x20] sm:$0xff]
    %v834 = vld [vmem:[#allocation17 + $0x28] sm:$0xff]
    %v835 = vld [vmem:[#allocation17 + $0x30] sm:$0xff]
    %v836 = vld [vmem:[#allocation17 + $0x38] sm:$0xff]
    %v837 = vld [vmem:[#allocation17 + $0x40] sm:$0xff]
    %v838 = vld [vmem:[#allocation17 + $0x48] sm:$0xff]
    %v839 = vld [vmem:[#allocation17 + $0x50] sm:$0xff]
    %v840 = vld [vmem:[#allocation17 + $0x58] sm:$0xff]
    %v841 = vld [vmem:[#allocation17 + $0x60] sm:$0xff]
    %v842 = vld [vmem:[#allocation17 + $0x68] sm:$0xff]
    %v843 = vld [vmem:[#allocation17 + $0x70] sm:$0xff]
    %v844 = vld [vmem:[#allocation17 + $0x78] sm:$0xff]
    %v845 = vld [vmem:[#allocation17 + $0x80] sm:$0xff]
    %v846 = vld [vmem:[#allocation17 + $0x88] sm:$0xff]
    %v847 = vld [vmem:[#allocation17 + $0x90] sm:$0xff]
    %v848 = vld [vmem:[#allocation17 + $0x98] sm:$0xff]
    %v849 = vld [vmem:[#allocation17 + $0xa0] sm:$0xff]
    %v850 = vld [vmem:[#allocation17 + $0xa8] sm:$0xff]
    %v851 = vld [vmem:[#allocation17 + $0xb0] sm:$0xff]
    %v852 = vld [vmem:[#allocation17 + $0xb8] sm:$0xff]
    %v853 = vld [vmem:[#allocation17 + $0xc0] sm:$0xff]
    %v854 = vld [vmem:[#allocation17 + $0xc8] sm:$0xff]
    %v855 = vld [vmem:[#allocation17 + $0xd0] sm:$0xff]
    %v856 = vld [vmem:[#allocation17 + $0xd8] sm:$0xff]
    %v857 = vld [vmem:[#allocation17 + $0xe0] sm:$0xff]
    %v858 = vld [vmem:[#allocation17 + $0xe8] sm:$0xff]
    %v859 = vld [vmem:[#allocation17 + $0xf0] sm:$0xff]
    %v860 = vld [vmem:[#allocation17 + $0xf8] sm:$0xff]
    %v861 = vld [vmem:[#allocation17 + $0x100] sm:$0xff]
    %v862 = vld [vmem:[#allocation17 + $0x108] sm:$0xff]
    %v863 = vld [vmem:[#allocation17 + $0x110] sm:$0xff]
    %v864 = vld [vmem:[#allocation17 + $0x118] sm:$0xff]
    %v865 = vld [vmem:[#allocation17 + $0x120] sm:$0xff]
    %v866 = vld [vmem:[#allocation17 + $0x128] sm:$0xff]
    %v867 = vld [vmem:[#allocation17 + $0x130] sm:$0xff]
    %v868 = vld [vmem:[#allocation17 + $0x138] sm:$0xff]
    %v869 = vld [vmem:[#allocation17 + $0x140] sm:$0xff]
    %v870 = vld [vmem:[#allocation17 + $0x148] sm:$0xff]
    %v871 = vld [vmem:[#allocation17 + $0x150] sm:$0xff]
    %v872 = vld [vmem:[#allocation17 + $0x158] sm:$0xff]
    %v873 = vld [vmem:[#allocation17 + $0x160] sm:$0xff]
    %v874 = vld [vmem:[#allocation17 + $0x168] sm:$0xff]
    %v875 = vld [vmem:[#allocation17 + $0x170] sm:$0xff]
    %v876 = vld [vmem:[#allocation17 + $0x178] sm:$0xff]
    %v877 = vld [vmem:[#allocation17 + $0x180] sm:$0xff]
    %v878 = vld [vmem:[#allocation17 + $0x188] sm:$0xff]
    %v879 = vld [vmem:[#allocation17 + $0x190] sm:$0xff]
    %v880 = vld [vmem:[#allocation17 + $0x198] sm:$0xff]
    %v881 = vld [vmem:[#allocation17 + $0x1a0] sm:$0xff]
    %v882 = vld [vmem:[#allocation17 + $0x1a8] sm:$0xff]
    %v883 = vld [vmem:[#allocation17 + $0x1b0] sm:$0xff]
    %v884 = vld [vmem:[#allocation17 + $0x1b8] sm:$0xff]
    %v885 = vld [vmem:[#allocation17 + $0x1c0] sm:$0xff]
    %v886 = vld [vmem:[#allocation17 + $0x1c8] sm:$0xff]
    %v887 = vld [vmem:[#allocation17 + $0x1d0] sm:$0xff]
    %v888 = vld [vmem:[#allocation17 + $0x1d8] sm:$0xff]
    %v889 = vld [vmem:[#allocation17 + $0x1e0] sm:$0xff]
    %v890 = vld [vmem:[#allocation17 + $0x1e8] sm:$0xff]
    %v891 = vld [vmem:[#allocation17 + $0x1f0] sm:$0xff]
    %v892 = vld [vmem:[#allocation17 + $0x1f8] sm:$0xff]
    %v893 = vld [vmem:[#allocation19] sm:$0x3]
    %v895 = vperm.slane %v893, 0
    %v896 = vperm.slane %v893, 1
    %899 = vmatpush.msra.mxu0 %v859
    %900 = vmatpush.msra.mxu0 %v857
    %901 = vmatpush.msra.mxu0 %v855
    %902 = vmatpush.msra.mxu0 %v853
    %903 = vmatpush.msra.mxu0 %v851
    %904 = vmatpush.msra.mxu0 %v849
    %905 = vmatpush.msra.mxu0 %v847
    %906 = vmatpush.msra.mxu0 %v845
    %907 = vmatpush.msra.mxu0 %v843
    %908 = vmatpush.msra.mxu0 %v841
    %909 = vmatpush.msra.mxu0 %v839
    %910 = vmatpush.msra.mxu0 %v837
    %911 = vmatpush.msra.mxu0 %v835
    %912 = vmatpush.msra.mxu0 %v833
    %913 = vmatpush.msra.mxu0 %v831
    %914 = vmatpush.msra.mxu0 %v829
    %915 = vmatmul.f32.gmra.mxu0 %v807
    %v916 = vpop.f32.mrf.mxu0
    %v917 = vadd.f32 %v895, %v916
    %918 = vdwg.mxu0
    %919 = vmatpush.msra.mxu0 %v891
    %920 = vmatpush.msra.mxu0 %v889
    %921 = vmatpush.msra.mxu0 %v887
    %922 = vmatpush.msra.mxu0 %v885
    %923 = vmatpush.msra.mxu0 %v883
    %924 = vmatpush.msra.mxu0 %v881
    %925 = vmatpush.msra.mxu0 %v879
    %926 = vmatpush.msra.mxu0 %v877
    %927 = vmatpush.msra.mxu0 %v875
    %928 = vmatpush.msra.mxu0 %v873
    %929 = vmatpush.msra.mxu0 %v871
    %930 = vmatpush.msra.mxu0 %v869
    %931 = vmatpush.msra.mxu0 %v867
    %932 = vmatpush.msra.mxu0 %v865
    %933 = vmatpush.msra.mxu0 %v863
    %934 = vmatpush.msra.mxu0 %v861
    %935 = vmatmul.f32.gmra.mxu0 %v827
    %v936 = vpop.f32.mrf.mxu0
    %v937 = vadd.f32 %v917, %v936
    %938 = vdwg.mxu0
    %939 = vmatpush.msra.mxu0 %v860
    %940 = vmatpush.msra.mxu0 %v858
    %941 = vmatpush.msra.mxu0 %v856
    %942 = vmatpush.msra.mxu0 %v854
    %943 = vmatpush.msra.mxu0 %v852
    %944 = vmatpush.msra.mxu0 %v850
    %945 = vmatpush.msra.mxu0 %v848
    %946 = vmatpush.msra.mxu0 %v846
    %947 = vmatpush.msra.mxu0 %v844
    %948 = vmatpush.msra.mxu0 %v842
    %949 = vmatpush.msra.mxu0 %v840
    %950 = vmatpush.msra.mxu0 %v838
    %951 = vmatpush.msra.mxu0 %v836
    %952 = vmatpush.msra.mxu0 %v834
    %953 = vmatpush.msra.mxu0 %v832
    %954 = vmatpush.msra.mxu0 %v830
    %955 = vmatmul.f32.gmra.mxu0 %v807
    %v956 = vpop.f32.mrf.mxu0
    %v957 = vadd.f32 %v896, %v956
    %958 = vdwg.mxu0
    %959 = vmatpush.msra.mxu0 %v892
    %960 = vmatpush.msra.mxu0 %v890
    %961 = vmatpush.msra.mxu0 %v888
    %962 = vmatpush.msra.mxu0 %v886
    %963 = vmatpush.msra.mxu0 %v884
    %964 = vmatpush.msra.mxu0 %v882
    %965 = vmatpush.msra.mxu0 %v880
    %966 = vmatpush.msra.mxu0 %v878
    %967 = vmatpush.msra.mxu0 %v876
    %968 = vmatpush.msra.mxu0 %v874
    %969 = vmatpush.msra.mxu0 %v872
    %970 = vmatpush.msra.mxu0 %v870
    %971 = vmatpush.msra.mxu0 %v868
    %972 = vmatpush.msra.mxu0 %v866
    %973 = vmatpush.msra.mxu0 %v864
    %974 = vmatpush.msra.mxu0 %v862
    %975 = vmatmul.f32.gmra.mxu0 %v827
    %v976 = vpop.f32.mrf.mxu0
    %v977 = vadd.f32 %v957, %v976
    %978 = vdwg.mxu0
    %v979 = vmax.f32 %v937, 0.0
    %v980 = vmax.f32 %v977, 0.0
    %v981 = vld [vmem:[#allocation20] sm:$0xff]
    %v982 = vld [vmem:[#allocation20 + $0x8] sm:$0xff]
    %v983 = vld [vmem:[#allocation20 + $0x10] sm:$0xff]
    %v984 = vld [vmem:[#allocation20 + $0x18] sm:$0xff]
    %v985 = vld [vmem:[#allocation20 + $0x20] sm:$0xff]
    %v986 = vld [vmem:[#allocation20 + $0x28] sm:$0xff]
    %v987 = vld [vmem:[#allocation20 + $0x30] sm:$0xff]
    %v988 = vld [vmem:[#allocation20 + $0x38] sm:$0xff]
    %v989 = vld [vmem:[#allocation20 + $0x40] sm:$0xff]
    %v990 = vld [vmem:[#allocation20 + $0x48] sm:$0xff]
    %v991 = vld [vmem:[#allocation20 + $0x50] sm:$0xff]
    %v992 = vld [vmem:[#allocation20 + $0x58] sm:$0xff]
    %v993 = vld [vmem:[#allocation20 + $0x60] sm:$0xff]
    %v994 = vld [vmem:[#allocation20 + $0x68] sm:$0xff]
    %v995 = vld [vmem:[#allocation20 + $0x70] sm:$0xff]
    %v996 = vld [vmem:[#allocation20 + $0x78] sm:$0xff]
    %v997 = vld [vmem:[#allocation20 + $0x80] sm:$0xff]
    %v998 = vld [vmem:[#allocation20 + $0x88] sm:$0xff]
    %v999 = vld [vmem:[#allocation20 + $0x90] sm:$0xff]
    %v1000 = vld [vmem:[#allocation20 + $0x98] sm:$0xff]
    %v1001 = vld [vmem:[#allocation20 + $0xa0] sm:$0xff]
    %v1002 = vld [vmem:[#allocation20 + $0xa8] sm:$0xff]
    %v1003 = vld [vmem:[#allocation20 + $0xb0] sm:$0xff]
    %v1004 = vld [vmem:[#allocation20 + $0xb8] sm:$0xff]
    %v1005 = vld [vmem:[#allocation20 + $0xc0] sm:$0xff]
    %v1006 = vld [vmem:[#allocation20 + $0xc8] sm:$0xff]
    %v1007 = vld [vmem:[#allocation20 + $0xd0] sm:$0xff]
    %v1008 = vld [vmem:[#allocation20 + $0xd8] sm:$0xff]
    %v1009 = vld [vmem:[#allocation20 + $0xe0] sm:$0xff]
    %v1010 = vld [vmem:[#allocation20 + $0xe8] sm:$0xff]
    %v1011 = vld [vmem:[#allocation20 + $0xf0] sm:$0xff]
    %v1012 = vld [vmem:[#allocation20 + $0xf8] sm:$0xff]
    %v1013 = vld [vmem:[#allocation20 + $0x100] sm:$0xff]
    %v1014 = vld [vmem:[#allocation20 + $0x108] sm:$0xff]
    %v1015 = vld [vmem:[#allocation20 + $0x110] sm:$0xff]
    %v1016 = vld [vmem:[#allocation20 + $0x118] sm:$0xff]
    %v1017 = vld [vmem:[#allocation20 + $0x120] sm:$0xff]
    %v1018 = vld [vmem:[#allocation20 + $0x128] sm:$0xff]
    %v1019 = vld [vmem:[#allocation20 + $0x130] sm:$0xff]
    %v1020 = vld [vmem:[#allocation20 + $0x138] sm:$0xff]
    %v1021 = vld [vmem:[#allocation20 + $0x140] sm:$0xff]
    %v1022 = vld [vmem:[#allocation20 + $0x148] sm:$0xff]
    %v1023 = vld [vmem:[#allocation20 + $0x150] sm:$0xff]
    %v1024 = vld [vmem:[#allocation20 + $0x158] sm:$0xff]
    %v1025 = vld [vmem:[#allocation20 + $0x160] sm:$0xff]
    %v1026 = vld [vmem:[#allocation20 + $0x168] sm:$0xff]
    %v1027 = vld [vmem:[#allocation20 + $0x170] sm:$0xff]
    %v1028 = vld [vmem:[#allocation20 + $0x178] sm:$0xff]
    %v1029 = vld [vmem:[#allocation20 + $0x180] sm:$0xff]
    %v1030 = vld [vmem:[#allocation20 + $0x188] sm:$0xff]
    %v1031 = vld [vmem:[#allocation20 + $0x190] sm:$0xff]
    %v1032 = vld [vmem:[#allocation20 + $0x198] sm:$0xff]
    %v1033 = vld [vmem:[#allocation20 + $0x1a0] sm:$0xff]
    %v1034 = vld [vmem:[#allocation20 + $0x1a8] sm:$0xff]
    %v1035 = vld [vmem:[#allocation20 + $0x1b0] sm:$0xff]
    %v1036 = vld [vmem:[#allocation20 + $0x1b8] sm:$0xff]
    %v1037 = vld [vmem:[#allocation20 + $0x1c0] sm:$0xff]
    %v1038 = vld [vmem:[#allocation20 + $0x1c8] sm:$0xff]
    %v1039 = vld [vmem:[#allocation20 + $0x1d0] sm:$0xff]
    %v1040 = vld [vmem:[#allocation20 + $0x1d8] sm:$0xff]
    %v1041 = vld [vmem:[#allocation20 + $0x1e0] sm:$0xff]
    %v1042 = vld [vmem:[#allocation20 + $0x1e8] sm:$0xff]
    %v1043 = vld [vmem:[#allocation20 + $0x1f0] sm:$0xff]
    %v1044 = vld [vmem:[#allocation20 + $0x1f8] sm:$0xff]
    %v1045 = vld [vmem:[#allocation20 + $0x200] sm:$0xff]
    %v1046 = vld [vmem:[#allocation20 + $0x208] sm:$0xff]
    %v1047 = vld [vmem:[#allocation20 + $0x210] sm:$0xff]
    %v1048 = vld [vmem:[#allocation20 + $0x218] sm:$0xff]
    %v1049 = vld [vmem:[#allocation20 + $0x220] sm:$0xff]
    %v1050 = vld [vmem:[#allocation20 + $0x228] sm:$0xff]
    %v1051 = vld [vmem:[#allocation20 + $0x230] sm:$0xff]
    %v1052 = vld [vmem:[#allocation20 + $0x238] sm:$0xff]
    %v1053 = vld [vmem:[#allocation20 + $0x240] sm:$0xff]
    %v1054 = vld [vmem:[#allocation20 + $0x248] sm:$0xff]
    %v1055 = vld [vmem:[#allocation20 + $0x250] sm:$0xff]
    %v1056 = vld [vmem:[#allocation20 + $0x258] sm:$0xff]
    %v1057 = vld [vmem:[#allocation20 + $0x260] sm:$0xff]
    %v1058 = vld [vmem:[#allocation20 + $0x268] sm:$0xff]
    %v1059 = vld [vmem:[#allocation20 + $0x270] sm:$0xff]
    %v1060 = vld [vmem:[#allocation20 + $0x278] sm:$0xff]
    %v1061 = vld [vmem:[#allocation20 + $0x280] sm:$0xff]
    %v1062 = vld [vmem:[#allocation20 + $0x288] sm:$0xff]
    %v1063 = vld [vmem:[#allocation20 + $0x290] sm:$0xff]
    %v1064 = vld [vmem:[#allocation20 + $0x298] sm:$0xff]
    %v1065 = vld [vmem:[#allocation20 + $0x2a0] sm:$0xff]
    %v1066 = vld [vmem:[#allocation20 + $0x2a8] sm:$0xff]
    %v1067 = vld [vmem:[#allocation20 + $0x2b0] sm:$0xff]
    %v1068 = vld [vmem:[#allocation20 + $0x2b8] sm:$0xff]
    %v1069 = vld [vmem:[#allocation20 + $0x2c0] sm:$0xff]
    %v1070 = vld [vmem:[#allocation20 + $0x2c8] sm:$0xff]
    %v1071 = vld [vmem:[#allocation20 + $0x2d0] sm:$0xff]
    %v1072 = vld [vmem:[#allocation20 + $0x2d8] sm:$0xff]
    %v1073 = vld [vmem:[#allocation20 + $0x2e0] sm:$0xff]
    %v1074 = vld [vmem:[#allocation20 + $0x2e8] sm:$0xff]
    %v1075 = vld [vmem:[#allocation20 + $0x2f0] sm:$0xff]
    %v1076 = vld [vmem:[#allocation20 + $0x2f8] sm:$0xff]
    %v1077 = vld [vmem:[#allocation20 + $0x300] sm:$0xff]
    %v1078 = vld [vmem:[#allocation20 + $0x308] sm:$0xff]
    %v1079 = vld [vmem:[#allocation20 + $0x310] sm:$0xff]
    %v1080 = vld [vmem:[#allocation20 + $0x318] sm:$0xff]
    %v1081 = vld [vmem:[#allocation20 + $0x320] sm:$0xff]
    %v1082 = vld [vmem:[#allocation20 + $0x328] sm:$0xff]
    %v1083 = vld [vmem:[#allocation20 + $0x330] sm:$0xff]
    %v1084 = vld [vmem:[#allocation20 + $0x338] sm:$0xff]
    %v1085 = vld [vmem:[#allocation20 + $0x340] sm:$0xff]
    %v1086 = vld [vmem:[#allocation20 + $0x348] sm:$0xff]
    %v1087 = vld [vmem:[#allocation20 + $0x350] sm:$0xff]
    %v1088 = vld [vmem:[#allocation20 + $0x358] sm:$0xff]
    %v1089 = vld [vmem:[#allocation20 + $0x360] sm:$0xff]
    %v1090 = vld [vmem:[#allocation20 + $0x368] sm:$0xff]
    %v1091 = vld [vmem:[#allocation20 + $0x370] sm:$0xff]
    %v1092 = vld [vmem:[#allocation20 + $0x378] sm:$0xff]
    %v1093 = vld [vmem:[#allocation20 + $0x380] sm:$0xff]
    %v1094 = vld [vmem:[#allocation20 + $0x388] sm:$0xff]
    %v1095 = vld [vmem:[#allocation20 + $0x390] sm:$0xff]
    %v1096 = vld [vmem:[#allocation20 + $0x398] sm:$0xff]
    %v1097 = vld [vmem:[#allocation20 + $0x3a0] sm:$0xff]
    %v1098 = vld [vmem:[#allocation20 + $0x3a8] sm:$0xff]
    %v1099 = vld [vmem:[#allocation20 + $0x3b0] sm:$0xff]
    %v1100 = vld [vmem:[#allocation20 + $0x3b8] sm:$0xff]
    %v1101 = vld [vmem:[#allocation20 + $0x3c0] sm:$0xff]
    %v1102 = vld [vmem:[#allocation20 + $0x3c8] sm:$0xff]
    %v1103 = vld [vmem:[#allocation20 + $0x3d0] sm:$0xff]
    %v1104 = vld [vmem:[#allocation20 + $0x3d8] sm:$0xff]
    %v1105 = vld [vmem:[#allocation20 + $0x3e0] sm:$0xff]
    %v1106 = vld [vmem:[#allocation20 + $0x3e8] sm:$0xff]
    %v1107 = vld [vmem:[#allocation20 + $0x3f0] sm:$0xff]
    %v1108 = vld [vmem:[#allocation20 + $0x3f8] sm:$0xff]
    %v1109 = vld [vmem:[%s13] sm:$0xf]
    %v1111 = vperm.slane %v1109, 0
    %v1112 = vperm.slane %v1109, 1
    %v1113 = vperm.slane %v1109, 2
    %v1114 = vperm.slane %v1109, 3
    %1119 = vmatpush.msra.mxu0 %v1041
    %1120 = vmatpush.msra.mxu0 %v1037
    %1121 = vmatpush.msra.mxu0 %v1033
    %1122 = vmatpush.msra.mxu0 %v1029
    %1123 = vmatpush.msra.mxu0 %v1025
    %1124 = vmatpush.msra.mxu0 %v1021
    %1125 = vmatpush.msra.mxu0 %v1017
    %1126 = vmatpush.msra.mxu0 %v1013
    %1127 = vmatpush.msra.mxu0 %v1009
    %1128 = vmatpush.msra.mxu0 %v1005
    %1129 = vmatpush.msra.mxu0 %v1001
    %1130 = vmatpush.msra.mxu0 %v997
    %1131 = vmatpush.msra.mxu0 %v993
    %1132 = vmatpush.msra.mxu0 %v989
    %1133 = vmatpush.msra.mxu0 %v985
    %1134 = vmatpush.msra.mxu0 %v981
    %1135 = vmatmul.f32.gmra.mxu0 %v979
    %v1136 = vpop.f32.mrf.mxu0
    %v1137 = vadd.f32 %v1111, %v1136
    %1138 = vdwg.mxu0
    %1139 = vmatpush.msra.mxu0 %v1105
    %1140 = vmatpush.msra.mxu0 %v1101
    %1141 = vmatpush.msra.mxu0 %v1097
    %1142 = vmatpush.msra.mxu0 %v1093
    %1143 = vmatpush.msra.mxu0 %v1089
    %1144 = vmatpush.msra.mxu0 %v1085
    %1145 = vmatpush.msra.mxu0 %v1081
    %1146 = vmatpush.msra.mxu0 %v1077
    %1147 = vmatpush.msra.mxu0 %v1073
    %1148 = vmatpush.msra.mxu0 %v1069
    %1149 = vmatpush.msra.mxu0 %v1065
    %1150 = vmatpush.msra.mxu0 %v1061
    %1151 = vmatpush.msra.mxu0 %v1057
    %1152 = vmatpush.msra.mxu0 %v1053
    %1153 = vmatpush.msra.mxu0 %v1049
    %1154 = vmatpush.msra.mxu0 %v1045
    %1155 = vmatmul.f32.gmra.mxu0 %v980
    %v1156 = vpop.f32.mrf.mxu0
    %v1157 = vadd.f32 %v1137, %v1156
    %1158 = vdwg.mxu0
    %1159 = vmatpush.msra.mxu0 %v1042
    %1160 = vmatpush.msra.mxu0 %v1038
    %1161 = vmatpush.msra.mxu0 %v1034
    %1162 = vmatpush.msra.mxu0 %v1030
    %1163 = vmatpush.msra.mxu0 %v1026
    %1164 = vmatpush.msra.mxu0 %v1022
    %1165 = vmatpush.msra.mxu0 %v1018
    %1166 = vmatpush.msra.mxu0 %v1014
    %1167 = vmatpush.msra.mxu0 %v1010
    %1168 = vmatpush.msra.mxu0 %v1006
    %1169 = vmatpush.msra.mxu0 %v1002
    %1170 = vmatpush.msra.mxu0 %v998
    %1171 = vmatpush.msra.mxu0 %v994
    %1172 = vmatpush.msra.mxu0 %v990
    %1173 = vmatpush.msra.mxu0 %v986
    %1174 = vmatpush.msra.mxu0 %v982
    %1175 = vmatmul.f32.gmra.mxu0 %v979
    %v1176 = vpop.f32.mrf.mxu0
    %v1177 = vadd.f32 %v1112, %v1176
    %1178 = vdwg.mxu0
    %1179 = vmatpush.msra.mxu0 %v1106
    %1180 = vmatpush.msra.mxu0 %v1102
    %1181 = vmatpush.msra.mxu0 %v1098
    %1182 = vmatpush.msra.mxu0 %v1094
    %1183 = vmatpush.msra.mxu0 %v1090
    %1184 = vmatpush.msra.mxu0 %v1086
    %1185 = vmatpush.msra.mxu0 %v1082
    %1186 = vmatpush.msra.mxu0 %v1078
    %1187 = vmatpush.msra.mxu0 %v1074
    %1188 = vmatpush.msra.mxu0 %v1070
    %1189 = vmatpush.msra.mxu0 %v1066
    %1190 = vmatpush.msra.mxu0 %v1062
    %1191 = vmatpush.msra.mxu0 %v1058
    %1192 = vmatpush.msra.mxu0 %v1054
    %1193 = vmatpush.msra.mxu0 %v1050
    %1194 = vmatpush.msra.mxu0 %v1046
    %1195 = vmatmul.f32.gmra.mxu0 %v980
    %v1196 = vpop.f32.mrf.mxu0
    %v1197 = vadd.f32 %v1177, %v1196
    %1198 = vdwg.mxu0
    %1199 = vmatpush.msra.mxu0 %v1043
    %1200 = vmatpush.msra.mxu0 %v1039
    %1201 = vmatpush.msra.mxu0 %v1035
    %1202 = vmatpush.msra.mxu0 %v1031
    %1203 = vmatpush.msra.mxu0 %v1027
    %1204 = vmatpush.msra.mxu0 %v1023
    %1205 = vmatpush.msra.mxu0 %v1019
    %1206 = vmatpush.msra.mxu0 %v1015
    %1207 = vmatpush.msra.mxu0 %v1011
    %1208 = vmatpush.msra.mxu0 %v1007
    %1209 = vmatpush.msra.mxu0 %v1003
    %1210 = vmatpush.msra.mxu0 %v999
    %1211 = vmatpush.msra.mxu0 %v995
    %1212 = vmatpush.msra.mxu0 %v991
    %1213 = vmatpush.msra.mxu0 %v987
    %1214 = vmatpush.msra.mxu0 %v983
    %1215 = vmatmul.f32.gmra.mxu0 %v979
    %v1216 = vpop.f32.mrf.mxu0
    %v1217 = vadd.f32 %v1113, %v1216
    %1218 = vdwg.mxu0
    %1219 = vmatpush.msra.mxu0 %v1107
    %1220 = vmatpush.msra.mxu0 %v1103
    %1221 = vmatpush.msra.mxu0 %v1099
    %1222 = vmatpush.msra.mxu0 %v1095
    %1223 = vmatpush.msra.mxu0 %v1091
    %1224 = vmatpush.msra.mxu0 %v1087
    %1225 = vmatpush.msra.mxu0 %v1083
    %1226 = vmatpush.msra.mxu0 %v1079
    %1227 = vmatpush.msra.mxu0 %v1075
    %1228 = vmatpush.msra.mxu0 %v1071
    %1229 = vmatpush.msra.mxu0 %v1067
    %1230 = vmatpush.msra.mxu0 %v1063
    %1231 = vmatpush.msra.mxu0 %v1059
    %1232 = vmatpush.msra.mxu0 %v1055
    %1233 = vmatpush.msra.mxu0 %v1051
    %1234 = vmatpush.msra.mxu0 %v1047
    %1235 = vmatmul.f32.gmra.mxu0 %v980
    %v1236 = vpop.f32.mrf.mxu0
    %v1237 = vadd.f32 %v1217, %v1236
    %1238 = vdwg.mxu0
    %1239 = vmatpush.msra.mxu0 %v1044
    %1240 = vmatpush.msra.mxu0 %v1040
    %1241 = vmatpush.msra.mxu0 %v1036
    %1242 = vmatpush.msra.mxu0 %v1032
    %1243 = vmatpush.msra.mxu0 %v1028
    %1244 = vmatpush.msra.mxu0 %v1024
    %1245 = vmatpush.msra.mxu0 %v1020
    %1246 = vmatpush.msra.mxu0 %v1016
    %1247 = vmatpush.msra.mxu0 %v1012
    %1248 = vmatpush.msra.mxu0 %v1008
    %1249 = vmatpush.msra.mxu0 %v1004
    %1250 = vmatpush.msra.mxu0 %v1000
    %1251 = vmatpush.msra.mxu0 %v996
    %1252 = vmatpush.msra.mxu0 %v992
    %1253 = vmatpush.msra.mxu0 %v988
    %1254 = vmatpush.msra.mxu0 %v984
    %1255 = vmatmul.f32.gmra.mxu0 %v979
    %v1256 = vpop.f32.mrf.mxu0
    %v1257 = vadd.f32 %v1114, %v1256
    %1258 = vdwg.mxu0
    %1259 = vmatpush.msra.mxu0 %v1108
    %1260 = vmatpush.msra.mxu0 %v1104
    %1261 = vmatpush.msra.mxu0 %v1100
    %1262 = vmatpush.msra.mxu0 %v1096
    %1263 = vmatpush.msra.mxu0 %v1092
    %1264 = vmatpush.msra.mxu0 %v1088
    %1265 = vmatpush.msra.mxu0 %v1084
    %1266 = vmatpush.msra.mxu0 %v1080
    %1267 = vmatpush.msra.mxu0 %v1076
    %1268 = vmatpush.msra.mxu0 %v1072
    %1269 = vmatpush.msra.mxu0 %v1068
    %1270 = vmatpush.msra.mxu0 %v1064
    %1271 = vmatpush.msra.mxu0 %v1060
    %1272 = vmatpush.msra.mxu0 %v1056
    %1273 = vmatpush.msra.mxu0 %v1052
    %1274 = vmatpush.msra.mxu0 %v1048
    %1275 = vmatmul.f32.gmra.mxu0 %v980
    %v1276 = vpop.f32.mrf.mxu0
    %v1277 = vadd.f32 %v1257, %v1276
    %1278 = vdwg.mxu0
    %v1279 = vxor.u32 %v1157, 2147483648
    %v1280 = vxor.u32 %v1197, 2147483648
    %v1281 = vxor.u32 %v1237, 2147483648
    %v1282 = vxor.u32 %v1277, 2147483648
    %v1283 = vmul.f32 %v1279, 1.442695
    %v1284 = vpow.pop %v1283
    %v1285 = vmul.f32 %v1280, 1.442695
    %v1286 = vpow.pop %v1285
    %v1287 = vmul.f32 %v1281, 1.442695
    %v1288 = vpow.pop %v1287
    %v1289 = vmul.f32 %v1282, 1.442695
    %v1290 = vpow.pop %v1289
    %v1291 = vadd.f32 %v1284, 1.0
    %v1292 = vadd.f32 %v1286, 1.0
    %v1293 = vadd.f32 %v1288, 1.0
    %v1294 = vadd.f32 %v1290, 1.0
    %v1295 = vrcp.pop %v1291
    %v1296 = vmul.f32 %v1291, %v1295
    %v1297 = vsub.f32 1.0, %v1296
    %v1298 = vmul.f32 %v1295, %v1297
    %v1299 = vadd.f32 %v1295, %v1298
    %vm1300 = vweird.f32 %v1291
    %vm1301 = vweird.f32 %v1295
    %vm1302 = vmor %vm1300, %vm1301
    %v1303 = vsel %vm1302, %v1295, %v1299
    %v1304 = vand.u32 2147483647, %v1291
    %vm1305 = vcmp.eq.f32.partialorder %v1304, 8.507059e+37
    %v1306 = vand.u32 %v1291, 2147483648
    %v1307 = vor.u32 1.1754944e-38, %v1306
    %v1308 = vsel %vm1305, %v1307, %v1303
    %v1309 = vmul.f32 1.0, %v1308
    %v1310 = vrcp.pop %v1292
    %v1311 = vmul.f32 %v1292, %v1310
    %v1312 = vsub.f32 1.0, %v1311
    %v1313 = vmul.f32 %v1310, %v1312
    %v1314 = vadd.f32 %v1310, %v1313
    %vm1315 = vweird.f32 %v1292
    %vm1316 = vweird.f32 %v1310
    %vm1317 = vmor %vm1315, %vm1316
    %v1318 = vsel %vm1317, %v1310, %v1314
    %v1319 = vand.u32 2147483647, %v1292
    %vm1320 = vcmp.eq.f32.partialorder %v1319, 8.507059e+37
    %v1321 = vand.u32 %v1292, 2147483648
    %v1322 = vor.u32 1.1754944e-38, %v1321
    %v1323 = vsel %vm1320, %v1322, %v1318
    %v1324 = vmul.f32 1.0, %v1323
    %v1325 = vrcp.pop %v1293
    %v1326 = vmul.f32 %v1293, %v1325
    %v1327 = vsub.f32 1.0, %v1326
    %v1328 = vmul.f32 %v1325, %v1327
    %v1329 = vadd.f32 %v1325, %v1328
    %vm1330 = vweird.f32 %v1293
    %vm1331 = vweird.f32 %v1325
    %vm1332 = vmor %vm1330, %vm1331
    %v1333 = vsel %vm1332, %v1325, %v1329
    %v1334 = vand.u32 2147483647, %v1293
    %vm1335 = vcmp.eq.f32.partialorder %v1334, 8.507059e+37
    %v1336 = vand.u32 %v1293, 2147483648
    %v1337 = vor.u32 1.1754944e-38, %v1336
    %v1338 = vsel %vm1335, %v1337, %v1333
    %v1339 = vmul.f32 1.0, %v1338
    %v1340 = vrcp.pop %v1294
    %v1341 = vmul.f32 %v1294, %v1340
    %v1342 = vsub.f32 1.0, %v1341
    %v1343 = vmul.f32 %v1340, %v1342
    %v1344 = vadd.f32 %v1340, %v1343
    %vm1345 = vweird.f32 %v1294
    %vm1346 = vweird.f32 %v1340
    %vm1347 = vmor %vm1345, %vm1346
    %v1348 = vsel %vm1347, %v1340, %v1344
    %v1349 = vand.u32 2147483647, %v1294
    %vm1350 = vcmp.eq.f32.partialorder %v1349, 8.507059e+37
    %v1351 = vand.u32 %v1294, 2147483648
    %v1352 = vor.u32 1.1754944e-38, %v1351
    %v1353 = vsel %vm1350, %v1352, %v1348
    %v1354 = vmul.f32 1.0, %v1353
    %1355 = vst [vmem:[#allocation22] sm:$0xff] %v1309
    %1356 = vst [vmem:[#allocation22 + $0x8] sm:$0xff] %v1324
    %1357 = vst [vmem:[#allocation22 + $0x10] sm:$0xff] %v1339
    %1358 = vst [vmem:[#allocation22 + $0x18] sm:$0xff] %v1354
    %1359 = vst.msk [vmem:[#allocation23] sm:$0xff] %vm785, %v751
    %1361 = vrot.lane.b32.xlu0 %v751, 64
    %v1362 = vpop.permute.xlu0 %1361
    %1364 = vst.msk [vmem:[#allocation25] sm:$0xff] %vm785, %v1362
    // Predicated region
    $region106: #{vae_forward_fused.1} parent=1 // pred_check
      _
    $region107: #{vae_forward_fused.1} parent=1 // pred_check_branch
      %1366 = sbr.rel (0) target = $region109
    $region108: #{vae_forward_fused.1} parent=1 // pred_region
      %1368 = vsyncadd [#allocation4], 0
      %s1370 = sshll.u32 [#allocation22], 4
      %s1371 = int_to_ptr.vmem [resolvable:$true] %s1370
      %s1372 = sshll.u32 %s14, 4
      %s1373 = int_to_ptr.hbm [resolvable:$true] %s1372
      %1375 = dma.vmem_to_hbm [thread:$0]  %s1371, 512, %s1373, [#allocation4]
    $region109: #{vae_forward_fused.1} parent=1 // pred_fallthru
      _
    // Predicated region
    $region110: #{vae_forward_fused.1} parent=1 // pred_check
      _
    $region111: #{vae_forward_fused.1} parent=1 // pred_check_branch
      %1377 = sbr.rel (0) target = $region113
    $region112: #{vae_forward_fused.1} parent=1 // pred_region
      %1379 = vsyncadd [#allocation24], 0
      %s1381 = sshll.u32 [#allocation23], 4
      %s1382 = int_to_ptr.vmem [resolvable:$true] %s1381
      %s1383 = sshll.u32 %s15, 4
      %s1384 = int_to_ptr.hbm [resolvable:$true] %s1383
      %1386 = dma.vmem_to_hbm [thread:$0]  %s1382, 128, %s1384, [#allocation24]
    $region113: #{vae_forward_fused.1} parent=1 // pred_fallthru
      _
    // Predicated region
    $region114: #{vae_forward_fused.1} parent=1 // pred_check
      _
    $region115: #{vae_forward_fused.1} parent=1 // pred_check_branch
      %1388 = sbr.rel (0) target = $region117
    $region116: #{vae_forward_fused.1} parent=1 // pred_region
      %1390 = vsyncadd [#allocation24], 0
      %s1392 = sshll.u32 [#allocation25], 4
      %s1393 = int_to_ptr.vmem [resolvable:$true] %s1392
      %s1394 = sshll.u32 %s16, 4
      %s1395 = int_to_ptr.hbm [resolvable:$true] %s1394
      %1397 = dma.vmem_to_hbm [thread:$0]  %s1393, 128, %s1395, [#allocation24]
    $region117: #{vae_forward_fused.1} parent=1 // pred_fallthru
      _
    // Predicated region
    $region118: #{vae_forward_fused.1} parent=1 // pred_check
      _
    $region119: #{vae_forward_fused.1} parent=1 // pred_check_branch
      %1399 = sbr.rel (0) target = $region121
    $region120: #{vae_forward_fused.1} parent=1 // pred_region
      %1401 = dma.done [#allocation4], 512
    $region121: #{vae_forward_fused.1} parent=1 // pred_fallthru
      _
    // Predicated region
    $region122: #{vae_forward_fused.1} parent=1 // pred_check
      _
    $region123: #{vae_forward_fused.1} parent=1 // pred_check_branch
      %1403 = sbr.rel (0) target = $region125
    $region124: #{vae_forward_fused.1} parent=1 // pred_region
      %1405 = dma.done [#allocation24], 128
    $region125: #{vae_forward_fused.1} parent=1 // pred_fallthru
      _
    // Predicated region
    $region126: #{vae_forward_fused.1} parent=1 // pred_check
      _
    $region127: #{vae_forward_fused.1} parent=1 // pred_check_branch
      %1407 = sbr.rel (0) target = $region129
    $region128: #{vae_forward_fused.1} parent=1 // pred_region
      %1409 = dma.done [#allocation24], 128
    $region129: #{vae_forward_fused.1} parent=1 // pred_fallthru
      _
    %1410 = vsyncpa [#allocation3], 1
    %1411 = vsyncpa [#allocation6], 1
    %1412 = vsyncpa [#allocation9], 1
    %1413 = vsyncpa [#allocation12], 1
    %1414 = vsyncpa [#allocation15], 1
    %1415 = vsyncpa [#allocation18], 1
    %1416 = vsyncpa [#allocation21], 1
    %1417 = vsyncpa [#allocation4], 1
    %1418 = vsyncpa [#allocation24], 1

</llo_original>
